<compile_context>
chip_gen: v7x
topology: tpu7x:2x2x1
jax: 0.10.0
libtpu: 0.0.40
codegen_flags: <defaults>
</compile_context>

<pallas_src>
import math
from functools import partial

import jax
import jax.numpy as jnp
import numpy as np
from jax import lax
from jax.experimental import pallas as pl
from jax.experimental.pallas import tpu as pltpu

# ----------------------------- hyper-parameters (LFCCPT defaults) --------------------
SAMPLE_RATE = 16000
N_FILTER = 128
F_MIN = 0.0
F_MAX = float(SAMPLE_RATE // 2)
N_LFCC = 40
N_FFT = 512
WIN_LENGTH = 320
HOP_LENGTH = 160
N_FREQS = N_FFT // 2 + 1        # 257 rfft bins
N_FREQS_K = N_FFT // 2          # 256 bins actually needed (fbank row at Nyquist is 0)
PREEMPH_COEFF = 0.97
LOG_OFFSET = 1e-6

HALO = 2                        # halo frames per tile side (exactly what delta-delta needs)
PAD_CHUNKS_L = HALO + 1         # padded chunk p holds original chunk p - 3
HALO_CHUNKS = 2 * HALO + 1      # 5 extra chunks per tile beyond its own tile_t chunks


# ----------------------------- constant matrices --------------------------------------
def _window_np():
    m = np.arange(WIN_LENGTH, dtype=np.float64)
    return 0.54 - 0.46 * np.cos(2.0 * np.pi * m / WIN_LENGTH)        # periodic hamming


def _linear_fbanks_np():
    # torchaudio.functional.linear_fbanks -> (257, 128)
    all_freqs = np.linspace(0.0, SAMPLE_RATE // 2, N_FREQS)
    f_pts = np.linspace(F_MIN, F_MAX, N_FILTER + 2)
    f_diff = f_pts[1:] - f_pts[:-1]
    slopes = f_pts[None, :] - all_freqs[:, None]
    down = (-1.0 * slopes[:, :-2]) / f_diff[:-1]
    up = slopes[:, 2:] / f_diff[1:]
    return np.maximum(0.0, np.minimum(down, up)).astype(np.float32)


def _dct_np():
    # torchaudio.functional.create_dct(n_lfcc, n_filter, norm='ortho'), pre-transpose
    n = np.arange(N_FILTER, dtype=np.float64)
    k = np.arange(N_LFCC, dtype=np.float64)[:, None]
    dct = np.cos(math.pi / N_FILTER * (n + 0.5) * k)
    dct[0] *= 1.0 / math.sqrt(2.0)
    dct *= math.sqrt(2.0 / N_FILTER)
    return dct.astype(np.float32)                                     # (40, 128)


def _fused_dft_matrices():
    # Windowed rDFT restricted to the 320 nonzero window rows (torch.stft centers the
    # 320-sample hamming window inside the 512-sample frame, so rows 0..95 / 416..511
    # of the full basis are identically zero).  Real & imag are fused along the columns
    # and the Nyquist bin is dropped.  Split into the two 160-row halves so the frame
    # matrix is never materialized:  re_im = chunk[t-1] @ top + chunk[t] @ bot.
    win = _window_np()
    pos = np.arange(WIN_LENGTH, dtype=np.float64) + (N_FFT - WIN_LENGTH) // 2
    k = np.arange(N_FREQS_K, dtype=np.float64)[None, :]
    ang = 2.0 * np.pi * pos[:, None] * k / N_FFT
    fused = np.concatenate([win[:, None] * np.cos(ang),
                            win[:, None] * np.sin(ang)], axis=1).astype(np.float32)
    return (jnp.asarray(fused[:HOP_LENGTH], dtype=jnp.bfloat16),      # (160, 512)
            jnp.asarray(fused[HOP_LENGTH:], dtype=jnp.bfloat16))      # (160, 512)


# ----------------------------- Pallas kernel ------------------------------------------
def _lfcc_tile_kernel(main_ref, halo_ref, wtop_ref, wbot_ref, fb_ref, dct_ref, out_ref,
                      *, tile_t, total_t):
    tt = tile_t
    ts = pl.program_id(1) * tt                    # first output frame of this tile

    main = main_ref[0]                            # (tt, 160)  bf16, padded chunks [ts, ts+tt)
    halo = halo_ref[0, 0]                         # (5, 160)   bf16, padded chunks [ts+tt, ts+tt+5)

    # Frame j (j = 0..tt+3, global frame g = ts - 2 + j) = [slab row j | slab row j+1],
    # slab row r = padded chunk ts + r.  Instead of materializing a (tt+4, 320) frame
    # matrix, the DFT is split across the two 160-sample halves of the window.
    a = jnp.concatenate([main, halo[:2 * HALO]], axis=0)              # slab rows 0..tt+3
    b = jnp.concatenate([main[1:], halo], axis=0)                     # slab rows 1..tt+4

    re_im = (jnp.dot(a, wtop_ref[...], preferred_element_type=jnp.float32)
             + jnp.dot(b, wbot_ref[...], preferred_element_type=jnp.float32))  # (tt+4, 512)
    re = re_im[:, :N_FREQS_K]
    im = re_im[:, N_FREQS_K:]
    power = re * re + im * im                                          # (tt+4, 256) f32

    # linear triangular filterbank (bf16 operands, f32 accumulate) + log
    filt = jnp.dot(power.astype(jnp.bfloat16), fb_ref[...],
                   preferred_element_type=jnp.float32)                 # (tt+4, 128)
    logf = jnp.log(filt + LOG_OFFSET)

    # DCT-II (ortho), produced directly time-on-lanes: lfcc^T = dct @ logf^T
    lfcc_t = lax.dot_general(dct_ref[...], logf, (((1,), (1,)), ((), ())),
                             preferred_element_type=jnp.float32)       # (40, tt+4)

    # Column j <-> global frame g = ts - 2 + j; replicate-clamp halo columns outside
    # [0, T-1] so the tile-local deltas see torchaudio's replicate padding.
    col = lax.broadcasted_iota(jnp.int32, lfcc_t.shape, 1)
    lfcc_c = jnp.where(col < 2 - ts, lfcc_t[:, HALO:HALO + 1], lfcc_t)   # g < 0   -> lfcc[0]
    right_at = total_t + 1 - ts                                          # column of g = T-1
    right_src = jnp.sum(jnp.where(col == right_at, lfcc_c, 0.0),
                        axis=1, keepdims=True)                           # masked pick (no dyn slice)
    lfcc_c = jnp.where(col > right_at, right_src, lfcc_c)                # g > T-1 -> lfcc[T-1]

    # ComputeDeltas(win_length=3): d[g] = (x[g+1] - x[g-1]) / 2 with replicate padding.
    # d1 column c <-> g = ts - 1 + c.  The second delta additionally needs the *first
    # delta* replicated at g == -1 and g == T, patched with the two jnp.where fix-ups.
    d1 = (lfcc_c[:, 2:] - lfcc_c[:, :-2]) * 0.5                          # (40, tt+2)
    lane = lax.broadcasted_iota(jnp.int32, d1.shape, 1)
    d1 = jnp.where(lane == -ts, d1[:, 1:2], d1)                          # g == -1 -> d1[g=0]
    d1_shift = jnp.concatenate([d1[:, :1], d1[:, :-1]], axis=1)          # col c <- col c-1
    d1 = jnp.where(lane == total_t - ts + 1, d1_shift, d1)               # g == T  -> d1[g=T-1]

    # three unmasked lane-dense sub-stores (40 rows = multiple of 8 sublanes each)
    out_ref[0, 0:N_LFCC, :] = lfcc_c[:, HALO:HALO + tt]
    out_ref[0, N_LFCC:2 * N_LFCC, :] = d1[:, 1:tt + 1]
    out_ref[0, 2 * N_LFCC:3 * N_LFCC, :] = (d1[:, 2:] - d1[:, :-2]) * 0.5


# ----------------------------- wrapper -------------------------------------------------
def lfcc_pt_forward(waveform, *, tile_t=None):
    """waveform: (B, L) float32  ->  (B, 3*n_lfcc, T) float32 with T = 1 + L // hop."""
    waveform = waveform.astype(jnp.float32)
    B, L = waveform.shape
    T = 1 + L // HOP_LENGTH

    if tile_t is None:
        tile_t = min(512, max(128, -(-T // 128) * 128))
        if B == 1 and T > 128:
            # keep >= 2 grid steps so both v7x TensorCores get parallel work
            tile_t = min(tile_t, max(128, -(-((T + 1) // 2) // 128) * 128))
    assert tile_t % 128 == 0, "tile_t must be a multiple of 128 (lane-dense output blocks)"
    n_tiles = -(-T // tile_t)

    # ---- glue: preemphasis (y[0]=x[0], y[i]=x[i]-0.97*x[i-1]) in f32 ----
    # TODO(synk): fold pre-emphasis into the kernel (needs one extra leading sample per
    # slab plus an end-of-signal mask); kept as fused XLA elementwise glue for robustness.
    pre = jnp.concatenate(
        [waveform[:, :1], waveform[:, 1:] - PREEMPH_COEFF * waveform[:, :-1]], axis=1)

    # ---- glue: lay the signal out as 160-sample chunks.  Padded chunk p holds original
    # chunk p - 3; chunks -3..-1 and everything past the signal are zeros, which is
    # exactly torch.stft's constant center padding (n_fft//2 = 256 >= the samples used).
    n_chunks = n_tiles * tile_t + HALO_CHUNKS
    pad_l = PAD_CHUNKS_L * HOP_LENGTH
    padded = jnp.pad(pre, ((0, 0), (pad_l, n_chunks * HOP_LENGTH - pad_l - L)))
    chunks = padded.astype(jnp.bfloat16).reshape(B, n_chunks, HOP_LENGTH)

    # per-tile 5-chunk halo (padded chunks [(i+1)*tt, (i+1)*tt + 5)); tiny, so a wrapper
    # gather is fine -- the bulk of the waveform flows through the non-overlapping main spec.
    halo_idx = (np.arange(n_tiles)[:, None] + 1) * tile_t + np.arange(HALO_CHUNKS)[None, :]
    halo = chunks[:, halo_idx]                                        # (B, n_tiles, 5, 160)

    w_top, w_bot = _fused_dft_matrices()                              # (160, 512) bf16 each
    fb = jnp.asarray(_linear_fbanks_np()[:N_FREQS_K], dtype=jnp.bfloat16)   # (256, 128)
    dct_t = jnp.asarray(_dct_np())                                    # (40, 128) f32

    kernel = partial(_lfcc_tile_kernel, tile_t=tile_t, total_t=T)
    out = pl.pallas_call(
        kernel,
        out_shape=jax.ShapeDtypeStruct((B, 3 * N_LFCC, T), jnp.float32),
        grid=(B, n_tiles),
        in_specs=[
            pl.BlockSpec((1, tile_t, HOP_LENGTH), lambda bi, ti: (bi, ti, 0)),
            pl.BlockSpec((1, 1, HALO_CHUNKS, HOP_LENGTH), lambda bi, ti: (bi, ti, 0, 0)),
            pl.BlockSpec((HOP_LENGTH, 2 * N_FREQS_K), lambda bi, ti: (0, 0)),
            pl.BlockSpec((HOP_LENGTH, 2 * N_FREQS_K), lambda bi, ti: (0, 0)),
            pl.BlockSpec((N_FREQS_K, N_FILTER), lambda bi, ti: (0, 0)),
            pl.BlockSpec((N_LFCC, N_FILTER), lambda bi, ti: (0, 0)),
        ],
        out_specs=pl.BlockSpec((1, 3 * N_LFCC, tile_t), lambda bi, ti: (bi, 0, ti)),
        compiler_params=pltpu.CompilerParams(
            dimension_semantics=("parallel", "parallel")),
    )(chunks, halo, w_top, w_bot, fb, dct_t)
    return out


# ----------------------------- pure-JAX reference (for a loose numerical check) --------
def _reference_lfccpt(waveform):
    wav = waveform.astype(jnp.float32)
    B, L = wav.shape
    T = 1 + L // HOP_LENGTH
    pre = jnp.concatenate([wav[:, :1], wav[:, 1:] - PREEMPH_COEFF * wav[:, :-1]], axis=1)
    pad = N_FFT // 2
    padded = jnp.pad(pre, ((0, 0), (pad, pad)))
    idx = np.arange(T)[:, None] * HOP_LENGTH + np.arange(N_FFT)[None, :]
    frames = padded[:, idx]                                           # (B, T, 512)
    win_p = np.zeros(N_FFT, dtype=np.float64)
    left = (N_FFT - WIN_LENGTH) // 2
    win_p[left:left + WIN_LENGTH] = _window_np()
    spec = jnp.fft.rfft(frames * jnp.asarray(win_p, jnp.float32), axis=-1)
    power = jnp.real(spec) ** 2 + jnp.imag(spec) ** 2                 # (B, T, 257)
    fb = jnp.asarray(_linear_fbanks_np())                             # (257, 128)
    logf = jnp.log(power @ fb + LOG_OFFSET)                           # (B, T, 128)
    dct_t = jnp.asarray(_dct_np())                                    # (40, 128)
    lfcc = jnp.einsum("btf,cf->bct", logf, dct_t)                     # (B, 40, T)

    def delta(x):
        xp = jnp.pad(x, ((0, 0), (0, 0), (1, 1)), mode="edge")
        return (xp[:, :, 2:] - xp[:, :, :-2]) * 0.5

    d1 = delta(lfcc)
    d2 = delta(d1)
    return jnp.concatenate([lfcc, d1, d2], axis=1)


if __name__ == "__main__":
    key = jax.random.PRNGKey(0)
    B, L = 2, 1280                     # T = 1 + 1280 // 160 = 9 frames
    waveform = jax.random.normal(key, (B, L), dtype=jnp.float32)

    out = jax.jit(lfcc_pt_forward)(waveform)
    out = jax.block_until_ready(out)

    expected_T = 1 + L // HOP_LENGTH
    assert out.shape == (B, 3 * N_LFCC, expected_T), out.shape
    assert out.dtype == jnp.float32
    assert bool(jnp.all(jnp.isfinite(out)))

    # loose sanity check against a pure-JAX float32 reference (kernel uses bf16 DFT/fbank)
    ref = jax.jit(_reference_lfccpt)(waveform)
    err = float(jnp.max(jnp.abs(out - ref)))
    assert err < 1.0, f"max abs error vs reference too large: {err}"

    print("KERNEL_OK")
</pallas_src>

<mosaic_0001>
module attributes {stable_mosaic.version = 11 : i64} {
  func.func @_lfcc_tile_kernel(%arg0: i32, %arg1: i32, %arg2: memref<1x128x160xbf16, #tpu.memory_space<vmem>>, %arg3: memref<1x1x5x160xbf16, #tpu.memory_space<vmem>>, %arg4: memref<160x512xbf16, #tpu.memory_space<vmem>>, %arg5: memref<160x512xbf16, #tpu.memory_space<vmem>>, %arg6: memref<256x128xbf16, #tpu.memory_space<vmem>>, %arg7: memref<40x128xf32, #tpu.memory_space<vmem>>, %arg8: memref<1x120x128xf32, #tpu.memory_space<vmem>>) attributes {dimension_semantics = [#tpu.dimension_semantics<parallel>, #tpu.dimension_semantics<parallel>], iteration_bounds = array<i64: 2, 1>, scalar_prefetch = 0 : i64, scratch_operands = 0 : i64, tpu.core_type = #tpu.core_type<tc>, window_params = [{transform_indices = @transform_0, window_bounds = array<i64: 1, 128, 160>}, {transform_indices = @transform_1, window_bounds = array<i64: 1, 1, 5, 160>}, {pipeline_mode = #tpu.pipeline_mode<synchronous>, transform_indices = @transform_2, window_bounds = array<i64: 160, 512>}, {pipeline_mode = #tpu.pipeline_mode<synchronous>, transform_indices = @transform_3, window_bounds = array<i64: 160, 512>}, {pipeline_mode = #tpu.pipeline_mode<synchronous>, transform_indices = @transform_4, window_bounds = array<i64: 256, 128>}, {pipeline_mode = #tpu.pipeline_mode<synchronous>, transform_indices = @transform_5, window_bounds = array<i64: 40, 128>}, {transform_indices = @transform_6, window_bounds = array<i64: 1, 120, 128>}]} {
    %c128_i32 = arith.constant 128 : i32
    %0 = arith.muli %arg1, %c128_i32 : i32
    %c0 = arith.constant 0 : index
    %c0_0 = arith.constant 0 : index
    %c0_1 = arith.constant 0 : index
    %1 = vector.load %arg2[%c0, %c0_0, %c0_1] : memref<1x128x160xbf16, #tpu.memory_space<vmem>>, vector<1x128x160xbf16>
    %2 = vector.shape_cast %1 : vector<1x128x160xbf16> to vector<128x160xbf16>
    %c0_2 = arith.constant 0 : index
    %c0_3 = arith.constant 0 : index
    %c0_4 = arith.constant 0 : index
    %c0_5 = arith.constant 0 : index
    %3 = vector.load %arg3[%c0_2, %c0_3, %c0_4, %c0_5] : memref<1x1x5x160xbf16, #tpu.memory_space<vmem>>, vector<1x1x5x160xbf16>
    %4 = vector.shape_cast %3 : vector<1x1x5x160xbf16> to vector<5x160xbf16>
    %5 = vector.extract_strided_slice %4 {offsets = [0, 0], sizes = [4, 160], strides = [1, 1]} : vector<5x160xbf16> to vector<4x160xbf16>
    %6 = tpu.concatenate %2, %5 in 0 : vector<128x160xbf16>, vector<4x160xbf16> -> vector<132x160xbf16>
    %7 = vector.extract_strided_slice %2 {offsets = [1, 0], sizes = [127, 160], strides = [1, 1]} : vector<128x160xbf16> to vector<127x160xbf16>
    %8 = tpu.concatenate %7, %4 in 0 : vector<127x160xbf16>, vector<5x160xbf16> -> vector<132x160xbf16>
    %c0_6 = arith.constant 0 : index
    %c0_7 = arith.constant 0 : index
    %9 = vector.load %arg4[%c0_6, %c0_7] : memref<160x512xbf16, #tpu.memory_space<vmem>>, vector<160x512xbf16>
    %cst = arith.constant dense<0.000000e+00> : vector<132x512xf32>
    %10 = tpu.matmul %6, %9, %cst {dimension_numbers = #tpu.dot_dimension_numbers<[1], [0], [0], [1], [0, 0, 1, 1], [], []>} : vector<132x160xbf16>, vector<160x512xbf16>, vector<132x512xf32> -> vector<132x512xf32>
    %c0_8 = arith.constant 0 : index
    %c0_9 = arith.constant 0 : index
    %11 = vector.load %arg5[%c0_8, %c0_9] : memref<160x512xbf16, #tpu.memory_space<vmem>>, vector<160x512xbf16>
    %cst_10 = arith.constant dense<0.000000e+00> : vector<132x512xf32>
    %12 = tpu.matmul %8, %11, %cst_10 {dimension_numbers = #tpu.dot_dimension_numbers<[1], [0], [0], [1], [0, 0, 1, 1], [], []>} : vector<132x160xbf16>, vector<160x512xbf16>, vector<132x512xf32> -> vector<132x512xf32>
    %13 = arith.addf %10, %12 : vector<132x512xf32>
    %14 = vector.extract_strided_slice %13 {offsets = [0, 0], sizes = [132, 256], strides = [1, 1]} : vector<132x512xf32> to vector<132x256xf32>
    %15 = vector.extract_strided_slice %13 {offsets = [0, 256], sizes = [132, 256], strides = [1, 1]} : vector<132x512xf32> to vector<132x256xf32>
    %16 = arith.mulf %14, %14 : vector<132x256xf32>
    %17 = arith.mulf %15, %15 : vector<132x256xf32>
    %18 = arith.addf %16, %17 : vector<132x256xf32>
    %19 = arith.truncf %18 : vector<132x256xf32> to vector<132x256xbf16>
    %c0_11 = arith.constant 0 : index
    %c0_12 = arith.constant 0 : index
    %20 = vector.load %arg6[%c0_11, %c0_12] : memref<256x128xbf16, #tpu.memory_space<vmem>>, vector<256x128xbf16>
    %cst_13 = arith.constant dense<0.000000e+00> : vector<132x128xf32>
    %21 = tpu.matmul %19, %20, %cst_13 {dimension_numbers = #tpu.dot_dimension_numbers<[1], [0], [0], [1], [0, 0, 1, 1], [], []>} : vector<132x256xbf16>, vector<256x128xbf16>, vector<132x128xf32> -> vector<132x128xf32>
    %cst_14 = arith.constant 9.99999997E-7 : f32
    %22 = vector.broadcast %cst_14 : f32 to vector<132x128xf32>
    %23 = arith.addf %21, %22 : vector<132x128xf32>
    %24 = math.log %23 : vector<132x128xf32>
    %c0_15 = arith.constant 0 : index
    %c0_16 = arith.constant 0 : index
    %25 = vector.load %arg7[%c0_15, %c0_16] : memref<40x128xf32, #tpu.memory_space<vmem>>, vector<40x128xf32>
    %cst_17 = arith.constant dense<0.000000e+00> : vector<40x132xf32>
    %26 = tpu.matmul %25, %24, %cst_17 {dimension_numbers = #tpu.dot_dimension_numbers<[1], [1], [0], [0], [0, 0, 1, 0], [], []>} : vector<40x128xf32>, vector<132x128xf32>, vector<40x132xf32> -> vector<40x132xf32>
    %27 = tpu.iota {dimensions = array<i32: 1>} : vector<40x132xi32>
    %c2_i32 = arith.constant 2 : i32
    %28 = arith.subi %c2_i32, %0 : i32
    %29 = vector.broadcast %28 : i32 to vector<40x132xi32>
    %30 = arith.cmpi slt, %27, %29 : vector<40x132xi32>
    %31 = vector.extract_strided_slice %26 {offsets = [0, 2], sizes = [40, 1], strides = [1, 1]} : vector<40x132xf32> to vector<40x1xf32>
    %32 = vector.shape_cast %31 : vector<40x1xf32> to vector<40x1xf32>
    %33 = vector.broadcast %32 : vector<40x1xf32> to vector<40x132xf32>
    %34 = arith.select %30, %33, %26 : vector<40x132xi1>, vector<40x132xf32>
    %c10_i32 = arith.constant 10 : i32
    %35 = arith.subi %c10_i32, %0 : i32
    %36 = vector.broadcast %35 : i32 to vector<40x132xi32>
    %37 = arith.cmpi eq, %27, %36 : vector<40x132xi32>
    %cst_18 = arith.constant 0.000000e+00 : f32
    %38 = vector.broadcast %cst_18 : f32 to vector<40x132xf32>
    %39 = arith.select %37, %34, %38 : vector<40x132xi1>, vector<40x132xf32>
    %cst_19 = arith.constant dense<0.000000e+00> : vector<40xf32>
    %40 = vector.multi_reduction <add>, %39, %cst_19 [1] : vector<40x132xf32> to vector<40xf32>
    %41 = vector.shape_cast %40 : vector<40xf32> to vector<40x1xf32>
    %42 = vector.broadcast %35 : i32 to vector<40x132xi32>
    %43 = arith.cmpi sgt, %27, %42 : vector<40x132xi32>
    %44 = vector.shape_cast %41 : vector<40x1xf32> to vector<40x1xf32>
    %45 = vector.broadcast %44 : vector<40x1xf32> to vector<40x132xf32>
    %46 = arith.select %43, %45, %34 : vector<40x132xi1>, vector<40x132xf32>
    %47 = vector.extract_strided_slice %46 {offsets = [0, 2], sizes = [40, 130], strides = [1, 1]} : vector<40x132xf32> to vector<40x130xf32>
    %48 = vector.extract_strided_slice %46 {offsets = [0, 0], sizes = [40, 130], strides = [1, 1]} : vector<40x132xf32> to vector<40x130xf32>
    %49 = arith.subf %47, %48 : vector<40x130xf32>
    %cst_20 = arith.constant 5.000000e-01 : f32
    %50 = vector.broadcast %cst_20 : f32 to vector<40x130xf32>
    %51 = arith.mulf %49, %50 : vector<40x130xf32>
    %52 = tpu.iota {dimensions = array<i32: 1>} : vector<40x130xi32>
    %c0_i32 = arith.constant 0 : i32
    %53 = arith.subi %c0_i32, %0 : i32
    %54 = vector.broadcast %53 : i32 to vector<40x130xi32>
    %55 = arith.cmpi eq, %52, %54 : vector<40x130xi32>
    %56 = vector.extract_strided_slice %51 {offsets = [0, 1], sizes = [40, 1], strides = [1, 1]} : vector<40x130xf32> to vector<40x1xf32>
    %57 = vector.shape_cast %56 : vector<40x1xf32> to vector<40x1xf32>
    %58 = vector.broadcast %57 : vector<40x1xf32> to vector<40x130xf32>
    %59 = arith.select %55, %58, %51 : vector<40x130xi1>, vector<40x130xf32>
    %60 = vector.extract_strided_slice %59 {offsets = [0, 0], sizes = [40, 1], strides = [1, 1]} : vector<40x130xf32> to vector<40x1xf32>
    %61 = vector.extract_strided_slice %59 {offsets = [0, 0], sizes = [40, 129], strides = [1, 1]} : vector<40x130xf32> to vector<40x129xf32>
    %62 = tpu.concatenate %60, %61 in 1 : vector<40x1xf32>, vector<40x129xf32> -> vector<40x130xf32>
    %c9_i32 = arith.constant 9 : i32
    %63 = arith.subi %c9_i32, %0 : i32
    %c1_i32 = arith.constant 1 : i32
    %64 = arith.addi %63, %c1_i32 : i32
    %65 = vector.broadcast %64 : i32 to vector<40x130xi32>
    %66 = arith.cmpi eq, %52, %65 : vector<40x130xi32>
    %67 = arith.select %66, %62, %59 : vector<40x130xi1>, vector<40x130xf32>
    %68 = vector.extract_strided_slice %46 {offsets = [0, 2], sizes = [40, 128], strides = [1, 1]} : vector<40x132xf32> to vector<40x128xf32>
    %c0_21 = arith.constant 0 : index
    %c0_22 = arith.constant 0 : index
    %c0_23 = arith.constant 0 : index
    %69 = vector.load %arg8[%c0_21, %c0_22, %c0_23] : memref<1x120x128xf32, #tpu.memory_space<vmem>>, vector<1x40x128xf32>
    %70 = vector.shape_cast %69 : vector<1x40x128xf32> to vector<40x128xf32>
    %71 = vector.shape_cast %68 : vector<40x128xf32> to vector<1x40x128xf32>
    tpu.vector_store %arg8[%c0_21, %c0_22, %c0_23], %71 {strides = array<i32>} : memref<1x120x128xf32, #tpu.memory_space<vmem>>, vector<1x40x128xf32>,
    %72 = vector.extract_strided_slice %67 {offsets = [0, 1], sizes = [40, 128], strides = [1, 1]} : vector<40x130xf32> to vector<40x128xf32>
    %c0_24 = arith.constant 0 : index
    %c40 = arith.constant 40 : index
    %c0_25 = arith.constant 0 : index
    %73 = vector.load %arg8[%c0_24, %c40, %c0_25] : memref<1x120x128xf32, #tpu.memory_space<vmem>>, vector<1x40x128xf32>
    %74 = vector.shape_cast %73 : vector<1x40x128xf32> to vector<40x128xf32>
    %75 = vector.shape_cast %72 : vector<40x128xf32> to vector<1x40x128xf32>
    tpu.vector_store %arg8[%c0_24, %c40, %c0_25], %75 {strides = array<i32>} : memref<1x120x128xf32, #tpu.memory_space<vmem>>, vector<1x40x128xf32>,
    %76 = vector.extract_strided_slice %67 {offsets = [0, 2], sizes = [40, 128], strides = [1, 1]} : vector<40x130xf32> to vector<40x128xf32>
    %77 = vector.extract_strided_slice %67 {offsets = [0, 0], sizes = [40, 128], strides = [1, 1]} : vector<40x130xf32> to vector<40x128xf32>
    %78 = arith.subf %76, %77 : vector<40x128xf32>
    %cst_26 = arith.constant 5.000000e-01 : f32
    %79 = vector.broadcast %cst_26 : f32 to vector<40x128xf32>
    %80 = arith.mulf %78, %79 : vector<40x128xf32>
    %c0_27 = arith.constant 0 : index
    %c80 = arith.constant 80 : index
    %c0_28 = arith.constant 0 : index
    %81 = vector.load %arg8[%c0_27, %c80, %c0_28] : memref<1x120x128xf32, #tpu.memory_space<vmem>>, vector<1x40x128xf32>
    %82 = vector.shape_cast %81 : vector<1x40x128xf32> to vector<40x128xf32>
    %83 = vector.shape_cast %80 : vector<40x128xf32> to vector<1x40x128xf32>
    tpu.vector_store %arg8[%c0_27, %c80, %c0_28], %83 {strides = array<i32>} : memref<1x120x128xf32, #tpu.memory_space<vmem>>, vector<1x40x128xf32>,
    return
  }
  func.func @transform_0(%arg0: i32, %arg1: i32) -> (i32, i32, i32) {
    %c0_i32 = arith.constant 0 : i32
    %c0_i32_0 = arith.constant 0 : i32
    return %arg0, %arg1, %c0_i32 : i32, i32, i32
  }
  func.func @transform_1(%arg0: i32, %arg1: i32) -> (i32, i32, i32, i32) {
    %c0_i32 = arith.constant 0 : i32
    %c0_i32_0 = arith.constant 0 : i32
    %c0_i32_1 = arith.constant 0 : i32
    return %arg0, %arg1, %c0_i32, %c0_i32_0 : i32, i32, i32, i32
  }
  func.func @transform_2(%arg0: i32, %arg1: i32) -> (i32, i32) {
    %c0_i32 = arith.constant 0 : i32
    %c0_i32_0 = arith.constant 0 : i32
    %c0_i32_1 = arith.constant 0 : i32
    return %c0_i32, %c0_i32_0 : i32, i32
  }
  func.func @transform_3(%arg0: i32, %arg1: i32) -> (i32, i32) {
    %c0_i32 = arith.constant 0 : i32
    %c0_i32_0 = arith.constant 0 : i32
    %c0_i32_1 = arith.constant 0 : i32
    return %c0_i32, %c0_i32_0 : i32, i32
  }
  func.func @transform_4(%arg0: i32, %arg1: i32) -> (i32, i32) {
    %c0_i32 = arith.constant 0 : i32
    %c0_i32_0 = arith.constant 0 : i32
    %c0_i32_1 = arith.constant 0 : i32
    return %c0_i32, %c0_i32_0 : i32, i32
  }
  func.func @transform_5(%arg0: i32, %arg1: i32) -> (i32, i32) {
    %c0_i32 = arith.constant 0 : i32
    %c0_i32_0 = arith.constant 0 : i32
    %c0_i32_1 = arith.constant 0 : i32
    return %c0_i32, %c0_i32_0 : i32, i32
  }
  func.func @transform_6(%arg0: i32, %arg1: i32) -> (i32, i32, i32) {
    %c0_i32 = arith.constant 0 : i32
    %c0_i32_0 = arith.constant 0 : i32
    return %arg0, %c0_i32, %arg1 : i32, i32, i32
  }
}

</mosaic_0001>

<llo_original>
// kernel: lfcc_pt_forward.1
$region0: #{lfcc_pt_forward.1}
  #allocation0 [shape = 'u32[]', space=smem, size = 0x4, offset = 0x4, fixed_abs, tag = 'smem constant byte address 0x4 - core index']
  #allocation1 [shape = 'u32[144,128]{1,0:T(1,128)}', space=vmem, size = 0x12000, scoped, tag = 'internal scratch']
  %s0 = inlined_call_operand.vmem [shape: bf16[2,133,160], index: 0, kind: input, shape index: {}]
  %s1 = inlined_call_operand.vmem [shape: bf16[2,1,5,160], index: 1, kind: input, shape index: {}]
  %s2 = inlined_call_operand.vmem [shape: bf16[160,512], index: 2, kind: input, shape index: {}]
  %s3 = inlined_call_operand.vmem [shape: bf16[160,512], index: 3, kind: input, shape index: {}]
  %s4 = inlined_call_operand.vmem [shape: bf16[256,128], index: 4, kind: input, shape index: {}]
  %s5 = inlined_call_operand.vmem [shape: f32[40,128], index: 5, kind: input, shape index: {}]
  %s6 = inlined_call_operand.vmem [shape: f32[2,120,9], index: 6, kind: output, shape index: {}]
  %s7 = sld [smem:[#allocation0]]
  $region57: #{lfcc_pt_forward.1} parent=0
    _
  %s9 = ssub.s32 1, %s7
  %s10 = scalar_select 0, %s9, %s7
  loop: start=0, step=1, limit=4
  $region2: #{lfcc_pt_forward.1} parent=0 // loop_pre_header
    _
  $region3: #{lfcc_pt_forward.1} parent=0 // loop_header
    %s12 = sphi 0, %s16
    %p13 = scmp.ge.s32.totalorder %s12, 4
    %s19 = sphi 0, %s31
    %s20 = sphi 0, %s27
    %s21 = sphi 0, %s19
    %s22 = sphi 0, %s20
    %s23 = sphi 0, %s21
    %s24 = sphi 0, %s22
    %s36 = sphi 0, %s38
    %s39 = sphi 0, %s36
    %s40 = sphi 0, %s39
    %s56 = sphi 0, %s40
    %s64 = sphi 0, %s66
    %s67 = sphi 0, %s64
    %s68 = sphi 0, %s67
    %s84 = sphi 0, %s68
    %s88 = sphi 0, %s88
    %s90 = sphi 0, %s88
    %s91 = sphi 0, %s90
    %s105 = sphi 0, %s91
    %s109 = sphi 0, %s109
    %s111 = sphi 0, %s109
    %s112 = sphi 0, %s111
    %s126 = sphi 0, %s112
    %s130 = sphi 0, %s130
    %s132 = sphi 0, %s130
    %s133 = sphi 0, %s132
    %s147 = sphi 0, %s133
    %s151 = sphi 0, %s151
    %s153 = sphi 0, %s151
    %s154 = sphi 0, %s153
    %s168 = sphi 0, %s154
    %s176 = sphi 0, %s178
    %s179 = sphi 0, %s176
    %s180 = sphi 0, %s179
    %s196 = sphi 0, %s180
  $region4: #{lfcc_pt_forward.1} parent=0 // loop_header_branch
    %15 = sbr.rel (%p13) target = $region8
  $region5: #{lfcc_pt_forward.1} parent=0 // loop_body
    %s17 = ssub.s32 %s12, 1
    %s18 = ssub.s32 %s12, 2
    %s25 = sadd.s32 1, %s20
    %p26 = scmp.ge.s32.totalorder %s25, 1
    %s27 = scalar_select %p26, 0, %s25
    %s28 = sadd.s32 1, %s19
    %s29 = scalar_select %p26, %s28, %s19
    %p30 = scmp.ge.s32.totalorder %s29, 2
    %s31 = scalar_select %p30, 0, %s29
    %s32 = ssub.s32 %s19, %s31
    %s33 = ssub.s32 %s20, %s27
    %s34 = sor.u32 %s32, %s33
    %p35 = scmp.eq.s32.totalorder %s34, 0
    %s37 = sadd.s32 %s36, 1
    %s38 = scalar_select %p35, %s36, %s37
    %p41 = pneg %p35
    %p42 = scmp.eq.s32.totalorder %s12, 1
    %p43 = por %p41, %p42
    %p44 = scmp.ne.s32.totalorder %s36, %s39
    %p45 = scmp.eq.s32.totalorder %s12, 0
    %p46 = por %p44, %p45
    %p47 = scmp.ne.s32.totalorder %s36, %s39
    %p48 = scmp.eq.s32.totalorder %s17, 1
    %p49 = por %p47, %p48
    %p50 = scmp.ne.s32.totalorder %s39, %s40
    %p51 = scmp.eq.s32.totalorder %s17, 0
    %p52 = por %p50, %p51
    %p53 = scmp.ne.s32.totalorder %s39, %s40
    %p54 = scmp.eq.s32.totalorder %s18, 1
    %p55 = por %p53, %p54
    %p57 = scmp.ne.s32.totalorder %s40, %s56
    %p58 = scmp.eq.s32.totalorder %s18, 0
    %p59 = por %p57, %p58
    %s60 = ssub.s32 %s19, %s31
    %s61 = ssub.s32 %s20, %s27
    %s62 = sor.u32 %s60, %s61
    %p63 = scmp.eq.s32.totalorder %s62, 0
    %s65 = sadd.s32 %s64, 1
    %s66 = scalar_select %p63, %s64, %s65
    %p69 = pneg %p63
    %p70 = scmp.eq.s32.totalorder %s12, 1
    %p71 = por %p69, %p70
    %p72 = scmp.ne.s32.totalorder %s64, %s67
    %p73 = scmp.eq.s32.totalorder %s12, 0
    %p74 = por %p72, %p73
    %p75 = scmp.ne.s32.totalorder %s64, %s67
    %p76 = scmp.eq.s32.totalorder %s17, 1
    %p77 = por %p75, %p76
    %p78 = scmp.ne.s32.totalorder %s67, %s68
    %p79 = scmp.eq.s32.totalorder %s17, 0
    %p80 = por %p78, %p79
    %p81 = scmp.ne.s32.totalorder %s67, %s68
    %p82 = scmp.eq.s32.totalorder %s18, 1
    %p83 = por %p81, %p82
    %p85 = scmp.ne.s32.totalorder %s68, %s84
    %p86 = scmp.eq.s32.totalorder %s18, 0
    %p87 = por %p85, %p86
    %s89 = sadd.s32 %s88, 1
    %p92 = scmp.eq.s32.totalorder %s12, 1
    %p93 = scmp.ne.s32.totalorder %s88, %s90
    %p94 = scmp.eq.s32.totalorder %s12, 0
    %p95 = por %p93, %p94
    %p96 = scmp.ne.s32.totalorder %s88, %s90
    %p97 = scmp.eq.s32.totalorder %s17, 1
    %p98 = por %p96, %p97
    %p99 = scmp.ne.s32.totalorder %s90, %s91
    %p100 = scmp.eq.s32.totalorder %s17, 0
    %p101 = por %p99, %p100
    %p102 = scmp.ne.s32.totalorder %s90, %s91
    %p103 = scmp.eq.s32.totalorder %s18, 1
    %p104 = por %p102, %p103
    %p106 = scmp.ne.s32.totalorder %s91, %s105
    %p107 = scmp.eq.s32.totalorder %s18, 0
    %p108 = por %p106, %p107
    %s110 = sadd.s32 %s109, 1
    %p113 = scmp.eq.s32.totalorder %s12, 1
    %p114 = scmp.ne.s32.totalorder %s109, %s111
    %p115 = scmp.eq.s32.totalorder %s12, 0
    %p116 = por %p114, %p115
    %p117 = scmp.ne.s32.totalorder %s109, %s111
    %p118 = scmp.eq.s32.totalorder %s17, 1
    %p119 = por %p117, %p118
    %p120 = scmp.ne.s32.totalorder %s111, %s112
    %p121 = scmp.eq.s32.totalorder %s17, 0
    %p122 = por %p120, %p121
    %p123 = scmp.ne.s32.totalorder %s111, %s112
    %p124 = scmp.eq.s32.totalorder %s18, 1
    %p125 = por %p123, %p124
    %p127 = scmp.ne.s32.totalorder %s112, %s126
    %p128 = scmp.eq.s32.totalorder %s18, 0
    %p129 = por %p127, %p128
    %s131 = sadd.s32 %s130, 1
    %p134 = scmp.eq.s32.totalorder %s12, 1
    %p135 = scmp.ne.s32.totalorder %s130, %s132
    %p136 = scmp.eq.s32.totalorder %s12, 0
    %p137 = por %p135, %p136
    %p138 = scmp.ne.s32.totalorder %s130, %s132
    %p139 = scmp.eq.s32.totalorder %s17, 1
    %p140 = por %p138, %p139
    %p141 = scmp.ne.s32.totalorder %s132, %s133
    %p142 = scmp.eq.s32.totalorder %s17, 0
    %p143 = por %p141, %p142
    %p144 = scmp.ne.s32.totalorder %s132, %s133
    %p145 = scmp.eq.s32.totalorder %s18, 1
    %p146 = por %p144, %p145
    %p148 = scmp.ne.s32.totalorder %s133, %s147
    %p149 = scmp.eq.s32.totalorder %s18, 0
    %p150 = por %p148, %p149
    %s152 = sadd.s32 %s151, 1
    %p155 = scmp.eq.s32.totalorder %s12, 1
    %p156 = scmp.ne.s32.totalorder %s151, %s153
    %p157 = scmp.eq.s32.totalorder %s12, 0
    %p158 = por %p156, %p157
    %p159 = scmp.ne.s32.totalorder %s151, %s153
    %p160 = scmp.eq.s32.totalorder %s17, 1
    %p161 = por %p159, %p160
    %p162 = scmp.ne.s32.totalorder %s153, %s154
    %p163 = scmp.eq.s32.totalorder %s17, 0
    %p164 = por %p162, %p163
    %p165 = scmp.ne.s32.totalorder %s153, %s154
    %p166 = scmp.eq.s32.totalorder %s18, 1
    %p167 = por %p165, %p166
    %p169 = scmp.ne.s32.totalorder %s154, %s168
    %p170 = scmp.eq.s32.totalorder %s18, 0
    %p171 = por %p169, %p170
    %s172 = ssub.s32 %s19, %s31
    %s173 = ssub.s32 %s20, %s27
    %s174 = sor.u32 %s172, %s173
    %p175 = scmp.eq.s32.totalorder %s174, 0
    %s177 = sadd.s32 %s176, 1
    %s178 = scalar_select %p175, %s176, %s177
    %p181 = pneg %p175
    %p182 = scmp.eq.s32.totalorder %s12, 1
    %p183 = por %p181, %p182
    %p184 = scmp.ne.s32.totalorder %s176, %s179
    %p185 = scmp.eq.s32.totalorder %s12, 0
    %p186 = por %p184, %p185
    %p187 = scmp.ne.s32.totalorder %s176, %s179
    %p188 = scmp.eq.s32.totalorder %s17, 1
    %p189 = por %p187, %p188
    %p190 = scmp.ne.s32.totalorder %s179, %s180
    %p191 = scmp.eq.s32.totalorder %s17, 0
    %p192 = por %p190, %p191
    %p193 = scmp.ne.s32.totalorder %s179, %s180
    %p194 = scmp.eq.s32.totalorder %s18, 1
    %p195 = por %p193, %p194
    %p197 = scmp.ne.s32.totalorder %s180, %s196
    %p198 = scmp.eq.s32.totalorder %s18, 0
    %p199 = por %p197, %p198
    %p200 = scmp.le.s32.totalorder 1, %s12
    %p201 = scmp.lt.s32.totalorder %s12, 3
    %p202 = pnand %p200, %p201
    %p203 = pneg %p202
    // Predicated region
    $region9: #{lfcc_pt_forward.1} parent=5 // pred_check
      _
    $region10: #{lfcc_pt_forward.1} parent=5 // pred_check_branch
      %205 = sbr.rel (%p202) target = $region12
    $region11: #{lfcc_pt_forward.1} parent=5 // pred_region
      %s206 = ssub.s32 %s12, 1
      // Predicated region
      $region13: #{lfcc_pt_forward.1} parent=11 // pred_check
        %p207 = pneg %p101
      $region14: #{lfcc_pt_forward.1} parent=11 // pred_check_branch
        %209 = sbr.rel (%p207) target = $region16
      $region15: #{lfcc_pt_forward.1} parent=11 // pred_region
        _
      $region16: #{lfcc_pt_forward.1} parent=11 // pred_fallthru
        _
      // Predicated region
      $region17: #{lfcc_pt_forward.1} parent=11 // pred_check
        %p210 = pneg %p122
      $region18: #{lfcc_pt_forward.1} parent=11 // pred_check_branch
        %212 = sbr.rel (%p210) target = $region20
      $region19: #{lfcc_pt_forward.1} parent=11 // pred_region
        _
      $region20: #{lfcc_pt_forward.1} parent=11 // pred_fallthru
        _
      // Predicated region
      $region21: #{lfcc_pt_forward.1} parent=11 // pred_check
        %p213 = pneg %p143
      $region22: #{lfcc_pt_forward.1} parent=11 // pred_check_branch
        %215 = sbr.rel (%p213) target = $region24
      $region23: #{lfcc_pt_forward.1} parent=11 // pred_region
        _
      $region24: #{lfcc_pt_forward.1} parent=11 // pred_fallthru
        _
      // Predicated region
      $region25: #{lfcc_pt_forward.1} parent=11 // pred_check
        %p216 = pneg %p164
      $region26: #{lfcc_pt_forward.1} parent=11 // pred_check_branch
        %218 = sbr.rel (%p216) target = $region28
      $region27: #{lfcc_pt_forward.1} parent=11 // pred_region
        _
      $region28: #{lfcc_pt_forward.1} parent=11 // pred_fallthru
        _
    $region12: #{lfcc_pt_forward.1} parent=5 // pred_fallthru
      _
    %p219 = scmp.lt.s32.totalorder %s12, 2
    // Predicated region
    $region29: #{lfcc_pt_forward.1} parent=5 // pred_check
      %p220 = pneg %p219
    $region30: #{lfcc_pt_forward.1} parent=5 // pred_check_branch
      %222 = sbr.rel (%p220) target = $region32
    $region31: #{lfcc_pt_forward.1} parent=5 // pred_region
      // Predicated region
      $region33: #{lfcc_pt_forward.1} parent=31 // pred_check
        %p223 = pneg %p46
      $region34: #{lfcc_pt_forward.1} parent=31 // pred_check_branch
        %225 = sbr.rel (%p223) target = $region36
      $region35: #{lfcc_pt_forward.1} parent=31 // pred_region
        %s226 = smul.u32 16, %s20
        %s227 = ssub.s32 17, %s226
        %p228 = scmp.lt.s32.totalorder %s227, 16
        %s229 = scalar_select %p228, %s227, 16
        %s230 = smul.u32 64, %s229
        %s231 = smul.u32 %s230, 2
        %p232 = scmp.lt.s32.totalorder %s19, 1
        %s233 = scalar_select %p232, %s19, 1
        %p234 = scmp.lt.s32.totalorder %s226, 16
        %s235 = scalar_select %p234, %s226, 16
        %s236 = smul.addr %s235, 2
        %s237 = smul.addr %s233, 34
        %s238 = sadd.s32 %s236, %s237
        %s239 = smul.addr %s238, 4
        %s240 = scalar_lea.vmem %s0, %s239
        %s241 = smul.u32 16, %s20
        %s242 = ssub.s32 17, %s241
        %p243 = scmp.lt.s32.totalorder %s242, 16
        %s244 = scalar_select %p243, %s242, 16
        %s245 = smul.u32 64, %s244
        %s246 = smul.u32 %s245, 2
      $region36: #{lfcc_pt_forward.1} parent=31 // pred_fallthru
        _
      // Predicated region
      $region37: #{lfcc_pt_forward.1} parent=31 // pred_check
        %p247 = pneg %p74
      $region38: #{lfcc_pt_forward.1} parent=31 // pred_check_branch
        %249 = sbr.rel (%p247) target = $region40
      $region39: #{lfcc_pt_forward.1} parent=31 // pred_region
        %p250 = scmp.lt.s32.totalorder %s19, 1
        %s251 = scalar_select %p250, %s19, 1
        %p252 = scmp.lt.s32.totalorder %s20, 0
        %s253 = scalar_select %p252, %s20, 0
        %s254 = smul.addr %s253, 2
        %s255 = smul.addr %s251, 2
        %s256 = sadd.s32 %s254, %s255
        %s257 = smul.addr %s256, 4
        %s258 = scalar_lea.vmem %s1, %s257
      $region40: #{lfcc_pt_forward.1} parent=31 // pred_fallthru
        _
    $region32: #{lfcc_pt_forward.1} parent=5 // pred_fallthru
      _
    %p259 = scmp.le.s32.totalorder 1, %s12
    %p260 = scmp.lt.s32.totalorder %s12, 3
    %p261 = pnand %p259, %p260
    %p262 = pneg %p261
    // Predicated region
    $region41: #{lfcc_pt_forward.1} parent=5 // pred_check
      _
    $region42: #{lfcc_pt_forward.1} parent=5 // pred_check_branch
      %264 = sbr.rel (%p261) target = $region44
    $region43: #{lfcc_pt_forward.1} parent=5 // pred_region
      %s265 = ssub.s32 %s12, 1
      %s266 = smul.u32 16, %s22
      %s267 = ssub.s32 17, %s266
      %p268 = scmp.lt.s32.totalorder %s267, 16
      %s269 = scalar_select %p268, %s267, 16
      %s270 = smul.u32 64, %s269
      %s271 = smul.u32 %s270, 2
      %p272 = scmp.lt.s32.totalorder %s21, 1
      %s273 = scalar_select %p272, %s21, 1
      %p274 = scmp.lt.s32.totalorder %s266, 16
      %s275 = scalar_select %p274, %s266, 16
      %s276 = smul.addr %s275, 2
      %s277 = smul.addr %s273, 34
      %s278 = sadd.s32 %s276, %s277
      %s279 = smul.addr %s278, 4
      %s280 = scalar_lea.vmem %s0, %s279
      %p281 = pneg %p52
      %p282 = pneg %p49
      %p283 = scmp.lt.s32.totalorder %s21, 1
      %s284 = scalar_select %p283, %s21, 1
      %p285 = scmp.lt.s32.totalorder %s22, 0
      %s286 = scalar_select %p285, %s22, 0
      %s287 = smul.addr %s286, 2
      %s288 = smul.addr %s284, 2
      %s289 = sadd.s32 %s287, %s288
      %s290 = smul.addr %s289, 4
      %s291 = scalar_lea.vmem %s1, %s290
      %p292 = pneg %p80
      %p293 = pneg %p77
      %p294 = pneg %p101
      %p295 = pneg %p98
      %p296 = pneg %p122
      %p297 = pneg %p119
      %p298 = pneg %p143
      %p299 = pneg %p140
      %p300 = pneg %p164
      %p301 = pneg %p161
      %p302 = pneg %p192
      %p303 = pneg %p189
      %p304 = scmp.lt.s32.totalorder %s21, 1
      %s305 = scalar_select %p304, %s21, 1
      %p306 = scmp.lt.s32.totalorder %s22, 0
      %s307 = scalar_select %p306, %s22, 0
      %s308 = smul.addr %s305, 15
      %s309 = sadd.s32 %s307, %s308
      %s310 = smul.addr %s309, 8
      %s311 = scalar_lea.vmem %s6, %s310
      %s312 = smul.u32 16, %s22
      %s313 = ssub.s32 17, %s312
      %p314 = scmp.lt.s32.totalorder %s313, 16
      %s315 = scalar_select %p314, %s313, 16
      %s316 = smul.u32 64, %s315
      %s317 = smul.u32 %s316, 2
      %p318 = scmp.lt.s32.totalorder %s21, 1
      %s319 = scalar_select %p318, %s21, 1
      %p320 = scmp.lt.s32.totalorder %s312, 16
      %s321 = scalar_select %p320, %s312, 16
      %s322 = smul.addr %s321, 2
      %s323 = smul.addr %s319, 34
      %s324 = sadd.s32 %s322, %s323
      %s325 = smul.addr %s324, 4
      %s326 = scalar_lea.vmem %s0, %s325
      %s327 = smul.u32 16, %s22
      %s328 = ssub.s32 17, %s327
      %p329 = scmp.lt.s32.totalorder %s328, 16
      %s330 = scalar_select %p329, %s328, 16
      %s331 = smul.u32 64, %s330
      %s332 = smul.u32 %s331, 2
      %p333 = scmp.lt.s32.totalorder %s21, 1
      %s334 = scalar_select %p333, %s21, 1
      %p335 = scmp.lt.s32.totalorder %s22, 0
      %s336 = scalar_select %p335, %s22, 0
      %s337 = smul.addr %s336, 2
      %s338 = smul.addr %s334, 2
      %s339 = sadd.s32 %s337, %s338
      %s340 = smul.addr %s339, 4
      %s341 = scalar_lea.vmem %s1, %s340
      %p342 = scmp.lt.s32.totalorder %s21, 1
      %s343 = scalar_select %p342, %s21, 1
      %p344 = scmp.lt.s32.totalorder %s22, 0
      %s345 = scalar_select %p344, %s22, 0
      %s346 = smul.addr %s343, 15
      %s347 = sadd.s32 %s345, %s346
      %s348 = smul.addr %s347, 8
      %s349 = scalar_lea.vmem %s6, %s348
      %s351 = smul.u32 %s22, 128
      %v352 = vld [vmem:[%s326] sm:$0xff]
      %v353 = vld [vmem:[%s326 + $0x8] sm:$0xff]
      %v354 = vld [vmem:[%s326 + $0x10] sm:$0xff]
      %v355 = vld [vmem:[%s326 + $0x18] sm:$0xff]
      %v356 = vld [vmem:[%s326 + $0x20] sm:$0xff]
      %v357 = vld [vmem:[%s326 + $0x28] sm:$0xff]
      %v358 = vld [vmem:[%s326 + $0x30] sm:$0xff]
      %v359 = vld [vmem:[%s326 + $0x38] sm:$0xff]
      %v360 = vld [vmem:[%s326 + $0x40] sm:$0xff]
      %v361 = vld [vmem:[%s326 + $0x48] sm:$0xff]
      %v362 = vld [vmem:[%s326 + $0x50] sm:$0xff]
      %v363 = vld [vmem:[%s326 + $0x58] sm:$0xff]
      %v364 = vld [vmem:[%s326 + $0x60] sm:$0xff]
      %v365 = vld [vmem:[%s326 + $0x68] sm:$0xff]
      %v366 = vld [vmem:[%s326 + $0x70] sm:$0xff]
      %v367 = vld [vmem:[%s326 + $0x78] sm:$0xff]
      %v368 = vld [vmem:[%s341] sm:$0x77]
      %v385 = vunpack.c.l.b16 %v352
      %v386 = vunpack.c.h.b16 %v352
      %v387 = vunpack.c.l.b16 %v353
      %v388 = vunpack.c.h.b16 %v353
      %v389 = vunpack.c.l.b16 %v354
      %v390 = vunpack.c.h.b16 %v354
      %v391 = vunpack.c.l.b16 %v355
      %v392 = vunpack.c.h.b16 %v355
      %v393 = vunpack.c.l.b16 %v356
      %v394 = vunpack.c.h.b16 %v356
      %v395 = vunpack.c.l.b16 %v357
      %v396 = vunpack.c.h.b16 %v357
      %v397 = vunpack.c.l.b16 %v358
      %v398 = vunpack.c.h.b16 %v358
      %v399 = vunpack.c.l.b16 %v359
      %v400 = vunpack.c.h.b16 %v359
      %v401 = vunpack.c.l.b16 %v360
      %v402 = vunpack.c.h.b16 %v360
      %v403 = vunpack.c.l.b16 %v361
      %v404 = vunpack.c.h.b16 %v361
      %v405 = vunpack.c.l.b16 %v362
      %v406 = vunpack.c.h.b16 %v362
      %v407 = vunpack.c.l.b16 %v363
      %v408 = vunpack.c.h.b16 %v363
      %v409 = vunpack.c.l.b16 %v364
      %v410 = vunpack.c.h.b16 %v364
      %v411 = vunpack.c.l.b16 %v365
      %v412 = vunpack.c.h.b16 %v365
      %v413 = vunpack.c.l.b16 %v366
      %v414 = vunpack.c.h.b16 %v366
      %v415 = vunpack.c.l.b16 %v367
      %v416 = vunpack.c.h.b16 %v367
      %v417 = vpack.c.b16 %v387, %v385
      %v418 = vpack.c.b16 %v388, %v386
      %v419 = vpack.c.b16 %v391, %v389
      %v420 = vpack.c.b16 %v392, %v390
      %v421 = vpack.c.b16 %v395, %v393
      %v422 = vpack.c.b16 %v396, %v394
      %v423 = vpack.c.b16 %v399, %v397
      %v424 = vpack.c.b16 %v400, %v398
      %v425 = vpack.c.b16 %v403, %v401
      %v426 = vpack.c.b16 %v404, %v402
      %v427 = vpack.c.b16 %v407, %v405
      %v428 = vpack.c.b16 %v408, %v406
      %v429 = vpack.c.b16 %v411, %v409
      %v430 = vpack.c.b16 %v412, %v410
      %v431 = vpack.c.b16 %v415, %v413
      %v432 = vpack.c.b16 %v416, %v414
      %v442 = vunpack.c.l.b16 %v368
      %v443 = vunpack.c.h.b16 %v368
      %v444 = vpack.c.b16 %v442, %v442
      %v445 = vpack.c.b16 %v443, %v443
      %vm447 = vsmask.f32 7424
      %v449 = vshrl.u32 %v417, 16
      %v451 = vshll.u32 %v417, 16
      %v453 = vrot.slane %v451, 1
      %v454 = vor.u32 %v449, %v453
      %v456 = vshll.u32 %v419, 16
      %v458 = vrot.slane %v456, 1
      %v459 = vsel %vm447, %v454, %v458
      %v461 = vshrl.u32 %v418, 16
      %v463 = vshll.u32 %v418, 16
      %v465 = vrot.slane %v463, 1
      %v466 = vor.u32 %v461, %v465
      %v468 = vshll.u32 %v420, 16
      %v470 = vrot.slane %v468, 1
      %v471 = vsel %vm447, %v466, %v470
      %v472 = vshrl.u32 %v419, 16
      %v474 = vor.u32 %v472, %v458
      %v476 = vshll.u32 %v421, 16
      %v478 = vrot.slane %v476, 1
      %v479 = vsel %vm447, %v474, %v478
      %v480 = vshrl.u32 %v420, 16
      %v482 = vor.u32 %v480, %v470
      %v484 = vshll.u32 %v422, 16
      %v486 = vrot.slane %v484, 1
      %v487 = vsel %vm447, %v482, %v486
      %v488 = vshrl.u32 %v421, 16
      %v490 = vor.u32 %v488, %v478
      %v492 = vshll.u32 %v423, 16
      %v494 = vrot.slane %v492, 1
      %v495 = vsel %vm447, %v490, %v494
      %v496 = vshrl.u32 %v422, 16
      %v498 = vor.u32 %v496, %v486
      %v500 = vshll.u32 %v424, 16
      %v502 = vrot.slane %v500, 1
      %v503 = vsel %vm447, %v498, %v502
      %v504 = vshrl.u32 %v423, 16
      %v506 = vor.u32 %v504, %v494
      %v508 = vshll.u32 %v425, 16
      %v510 = vrot.slane %v508, 1
      %v511 = vsel %vm447, %v506, %v510
      %v512 = vshrl.u32 %v424, 16
      %v514 = vor.u32 %v512, %v502
      %v516 = vshll.u32 %v426, 16
      %v518 = vrot.slane %v516, 1
      %v519 = vsel %vm447, %v514, %v518
      %v520 = vshrl.u32 %v425, 16
      %v522 = vor.u32 %v520, %v510
      %v524 = vshll.u32 %v427, 16
      %v526 = vrot.slane %v524, 1
      %v527 = vsel %vm447, %v522, %v526
      %v528 = vshrl.u32 %v426, 16
      %v530 = vor.u32 %v528, %v518
      %v532 = vshll.u32 %v428, 16
      %v534 = vrot.slane %v532, 1
      %v535 = vsel %vm447, %v530, %v534
      %v536 = vshrl.u32 %v427, 16
      %v538 = vor.u32 %v536, %v526
      %v540 = vshll.u32 %v429, 16
      %v542 = vrot.slane %v540, 1
      %v543 = vsel %vm447, %v538, %v542
      %v544 = vshrl.u32 %v428, 16
      %v546 = vor.u32 %v544, %v534
      %v548 = vshll.u32 %v430, 16
      %v550 = vrot.slane %v548, 1
      %v551 = vsel %vm447, %v546, %v550
      %v552 = vshrl.u32 %v429, 16
      %v554 = vor.u32 %v552, %v542
      %v556 = vshll.u32 %v431, 16
      %v558 = vrot.slane %v556, 1
      %v559 = vsel %vm447, %v554, %v558
      %v560 = vshrl.u32 %v430, 16
      %v562 = vor.u32 %v560, %v550
      %v564 = vshll.u32 %v432, 16
      %v566 = vrot.slane %v564, 1
      %v567 = vsel %vm447, %v562, %v566
      %v568 = vshrl.u32 %v431, 16
      %v570 = vor.u32 %v568, %v558
      %v571 = vshrl.u32 %v432, 16
      %v573 = vor.u32 %v571, %v566
      %v584 = vshll.u32 %v444, 16
      %v586 = vrot.slane %v584, 1
      %v588 = vshll.u32 %v445, 16
      %v590 = vrot.slane %v588, 1
      %v591 = vshrl.u32 %v444, 16
      %v593 = vor.u32 %v591, %v586
      %v594 = vshrl.u32 %v445, 16
      %v596 = vor.u32 %v594, %v590
      %vm600 = vcmask 1047552
      %vm601 = vmand %vm600, %vm447
      %v602 = vsel %vm601, %v570, %v586
      %v603 = vsel %vm601, %v573, %v590
      %v604 = vld [vmem:[%s2] sm:$0xff]
      %v605 = vld [vmem:[%s2 + $0x8] sm:$0xff]
      %v606 = vld [vmem:[%s2 + $0x10] sm:$0xff]
      %v607 = vld [vmem:[%s2 + $0x18] sm:$0xff]
      %v608 = vld [vmem:[%s2 + $0x20] sm:$0xff]
      %v609 = vld [vmem:[%s2 + $0x28] sm:$0xff]
      %v610 = vld [vmem:[%s2 + $0x30] sm:$0xff]
      %v611 = vld [vmem:[%s2 + $0x38] sm:$0xff]
      %v612 = vld [vmem:[%s2 + $0x40] sm:$0xff]
      %v613 = vld [vmem:[%s2 + $0x48] sm:$0xff]
      %v614 = vld [vmem:[%s2 + $0x50] sm:$0xff]
      %v615 = vld [vmem:[%s2 + $0x58] sm:$0xff]
      %v616 = vld [vmem:[%s2 + $0x60] sm:$0xff]
      %v617 = vld [vmem:[%s2 + $0x68] sm:$0xff]
      %v618 = vld [vmem:[%s2 + $0x70] sm:$0xff]
      %v619 = vld [vmem:[%s2 + $0x78] sm:$0xff]
      %v620 = vld [vmem:[%s2 + $0x80] sm:$0xff]
      %v621 = vld [vmem:[%s2 + $0x88] sm:$0xff]
      %v622 = vld [vmem:[%s2 + $0x90] sm:$0xff]
      %v623 = vld [vmem:[%s2 + $0x98] sm:$0xff]
      %v624 = vld [vmem:[%s2 + $0xa0] sm:$0xff]
      %v625 = vld [vmem:[%s2 + $0xa8] sm:$0xff]
      %v626 = vld [vmem:[%s2 + $0xb0] sm:$0xff]
      %v627 = vld [vmem:[%s2 + $0xb8] sm:$0xff]
      %v628 = vld [vmem:[%s2 + $0xc0] sm:$0xff]
      %v629 = vld [vmem:[%s2 + $0xc8] sm:$0xff]
      %v630 = vld [vmem:[%s2 + $0xd0] sm:$0xff]
      %v631 = vld [vmem:[%s2 + $0xd8] sm:$0xff]
      %v632 = vld [vmem:[%s2 + $0xe0] sm:$0xff]
      %v633 = vld [vmem:[%s2 + $0xe8] sm:$0xff]
      %v634 = vld [vmem:[%s2 + $0xf0] sm:$0xff]
      %v635 = vld [vmem:[%s2 + $0xf8] sm:$0xff]
      %v636 = vld [vmem:[%s2 + $0x100] sm:$0xff]
      %v637 = vld [vmem:[%s2 + $0x108] sm:$0xff]
      %v638 = vld [vmem:[%s2 + $0x110] sm:$0xff]
      %v639 = vld [vmem:[%s2 + $0x118] sm:$0xff]
      %v640 = vld [vmem:[%s2 + $0x120] sm:$0xff]
      %v641 = vld [vmem:[%s2 + $0x128] sm:$0xff]
      %v642 = vld [vmem:[%s2 + $0x130] sm:$0xff]
      %v643 = vld [vmem:[%s2 + $0x138] sm:$0xff]
      %v644 = vld [vmem:[%s3] sm:$0xff]
      %v645 = vld [vmem:[%s3 + $0x8] sm:$0xff]
      %v646 = vld [vmem:[%s3 + $0x10] sm:$0xff]
      %v647 = vld [vmem:[%s3 + $0x18] sm:$0xff]
      %v648 = vld [vmem:[%s3 + $0x20] sm:$0xff]
      %v649 = vld [vmem:[%s3 + $0x28] sm:$0xff]
      %v650 = vld [vmem:[%s3 + $0x30] sm:$0xff]
      %v651 = vld [vmem:[%s3 + $0x38] sm:$0xff]
      %v652 = vld [vmem:[%s3 + $0x40] sm:$0xff]
      %v653 = vld [vmem:[%s3 + $0x48] sm:$0xff]
      %v654 = vld [vmem:[%s3 + $0x50] sm:$0xff]
      %v655 = vld [vmem:[%s3 + $0x58] sm:$0xff]
      %v656 = vld [vmem:[%s3 + $0x60] sm:$0xff]
      %v657 = vld [vmem:[%s3 + $0x68] sm:$0xff]
      %v658 = vld [vmem:[%s3 + $0x70] sm:$0xff]
      %v659 = vld [vmem:[%s3 + $0x78] sm:$0xff]
      %v660 = vld [vmem:[%s3 + $0x80] sm:$0xff]
      %v661 = vld [vmem:[%s3 + $0x88] sm:$0xff]
      %v662 = vld [vmem:[%s3 + $0x90] sm:$0xff]
      %v663 = vld [vmem:[%s3 + $0x98] sm:$0xff]
      %v664 = vld [vmem:[%s3 + $0xa0] sm:$0xff]
      %v665 = vld [vmem:[%s3 + $0xa8] sm:$0xff]
      %v666 = vld [vmem:[%s3 + $0xb0] sm:$0xff]
      %v667 = vld [vmem:[%s3 + $0xb8] sm:$0xff]
      %v668 = vld [vmem:[%s3 + $0xc0] sm:$0xff]
      %v669 = vld [vmem:[%s3 + $0xc8] sm:$0xff]
      %v670 = vld [vmem:[%s3 + $0xd0] sm:$0xff]
      %v671 = vld [vmem:[%s3 + $0xd8] sm:$0xff]
      %v672 = vld [vmem:[%s3 + $0xe0] sm:$0xff]
      %v673 = vld [vmem:[%s3 + $0xe8] sm:$0xff]
      %v674 = vld [vmem:[%s3 + $0xf0] sm:$0xff]
      %v675 = vld [vmem:[%s3 + $0xf8] sm:$0xff]
      %v676 = vld [vmem:[%s3 + $0x100] sm:$0xff]
      %v677 = vld [vmem:[%s3 + $0x108] sm:$0xff]
      %v678 = vld [vmem:[%s3 + $0x110] sm:$0xff]
      %v679 = vld [vmem:[%s3 + $0x118] sm:$0xff]
      %v680 = vld [vmem:[%s3 + $0x120] sm:$0xff]
      %v681 = vld [vmem:[%s3 + $0x128] sm:$0xff]
      %v682 = vld [vmem:[%s3 + $0x130] sm:$0xff]
      %v683 = vld [vmem:[%s3 + $0x138] sm:$0xff]
      %v724 = vunpack.c.l.b16 %v644
      %v725 = vunpack.c.h.b16 %v644
      %v726 = vunpack.c.l.b16 %v645
      %v727 = vunpack.c.h.b16 %v645
      %v728 = vunpack.c.l.b16 %v646
      %v729 = vunpack.c.h.b16 %v646
      %v730 = vunpack.c.l.b16 %v647
      %v731 = vunpack.c.h.b16 %v647
      %v732 = vunpack.c.l.b16 %v648
      %v733 = vunpack.c.h.b16 %v648
      %v734 = vunpack.c.l.b16 %v649
      %v735 = vunpack.c.h.b16 %v649
      %v736 = vunpack.c.l.b16 %v650
      %v737 = vunpack.c.h.b16 %v650
      %v738 = vunpack.c.l.b16 %v651
      %v739 = vunpack.c.h.b16 %v651
      %v740 = vunpack.c.l.b16 %v652
      %v741 = vunpack.c.h.b16 %v652
      %v742 = vunpack.c.l.b16 %v653
      %v743 = vunpack.c.h.b16 %v653
      %v744 = vunpack.c.l.b16 %v654
      %v745 = vunpack.c.h.b16 %v654
      %v746 = vunpack.c.l.b16 %v655
      %v747 = vunpack.c.h.b16 %v655
      %v748 = vunpack.c.l.b16 %v656
      %v749 = vunpack.c.h.b16 %v656
      %v750 = vunpack.c.l.b16 %v657
      %v751 = vunpack.c.h.b16 %v657
      %v752 = vunpack.c.l.b16 %v658
      %v753 = vunpack.c.h.b16 %v658
      %v754 = vunpack.c.l.b16 %v659
      %v755 = vunpack.c.h.b16 %v659
      %v756 = vunpack.c.l.b16 %v660
      %v757 = vunpack.c.h.b16 %v660
      %v758 = vunpack.c.l.b16 %v661
      %v759 = vunpack.c.h.b16 %v661
      %v760 = vunpack.c.l.b16 %v662
      %v761 = vunpack.c.h.b16 %v662
      %v762 = vunpack.c.l.b16 %v663
      %v763 = vunpack.c.h.b16 %v663
      %v764 = vunpack.c.l.b16 %v664
      %v765 = vunpack.c.h.b16 %v664
      %v766 = vunpack.c.l.b16 %v665
      %v767 = vunpack.c.h.b16 %v665
      %v768 = vunpack.c.l.b16 %v666
      %v769 = vunpack.c.h.b16 %v666
      %v770 = vunpack.c.l.b16 %v667
      %v771 = vunpack.c.h.b16 %v667
      %v772 = vunpack.c.l.b16 %v668
      %v773 = vunpack.c.h.b16 %v668
      %v774 = vunpack.c.l.b16 %v669
      %v775 = vunpack.c.h.b16 %v669
      %v776 = vunpack.c.l.b16 %v670
      %v777 = vunpack.c.h.b16 %v670
      %v778 = vunpack.c.l.b16 %v671
      %v779 = vunpack.c.h.b16 %v671
      %v780 = vunpack.c.l.b16 %v672
      %v781 = vunpack.c.h.b16 %v672
      %v782 = vunpack.c.l.b16 %v673
      %v783 = vunpack.c.h.b16 %v673
      %v784 = vunpack.c.l.b16 %v674
      %v785 = vunpack.c.h.b16 %v674
      %v786 = vunpack.c.l.b16 %v675
      %v787 = vunpack.c.h.b16 %v675
      %v788 = vunpack.c.l.b16 %v676
      %v789 = vunpack.c.h.b16 %v676
      %v790 = vunpack.c.l.b16 %v677
      %v791 = vunpack.c.h.b16 %v677
      %v792 = vunpack.c.l.b16 %v678
      %v793 = vunpack.c.h.b16 %v678
      %v794 = vunpack.c.l.b16 %v679
      %v795 = vunpack.c.h.b16 %v679
      %v796 = vunpack.c.l.b16 %v680
      %v797 = vunpack.c.h.b16 %v680
      %v798 = vunpack.c.l.b16 %v681
      %v799 = vunpack.c.h.b16 %v681
      %v800 = vunpack.c.l.b16 %v682
      %v801 = vunpack.c.h.b16 %v682
      %v802 = vunpack.c.l.b16 %v683
      %v803 = vunpack.c.h.b16 %v683
      %v804 = vpack.c.b16 %v728, %v724
      %v805 = vpack.c.b16 %v729, %v725
      %v806 = vpack.c.b16 %v730, %v726
      %v807 = vpack.c.b16 %v731, %v727
      %v808 = vpack.c.b16 %v736, %v732
      %v809 = vpack.c.b16 %v737, %v733
      %v810 = vpack.c.b16 %v738, %v734
      %v811 = vpack.c.b16 %v739, %v735
      %v812 = vpack.c.b16 %v744, %v740
      %v813 = vpack.c.b16 %v745, %v741
      %v814 = vpack.c.b16 %v746, %v742
      %v815 = vpack.c.b16 %v747, %v743
      %v816 = vpack.c.b16 %v752, %v748
      %v817 = vpack.c.b16 %v753, %v749
      %v818 = vpack.c.b16 %v754, %v750
      %v819 = vpack.c.b16 %v755, %v751
      %v820 = vpack.c.b16 %v760, %v756
      %v821 = vpack.c.b16 %v761, %v757
      %v822 = vpack.c.b16 %v762, %v758
      %v823 = vpack.c.b16 %v763, %v759
      %v824 = vpack.c.b16 %v768, %v764
      %v825 = vpack.c.b16 %v769, %v765
      %v826 = vpack.c.b16 %v770, %v766
      %v827 = vpack.c.b16 %v771, %v767
      %v828 = vpack.c.b16 %v776, %v772
      %v829 = vpack.c.b16 %v777, %v773
      %v830 = vpack.c.b16 %v778, %v774
      %v831 = vpack.c.b16 %v779, %v775
      %v832 = vpack.c.b16 %v784, %v780
      %v833 = vpack.c.b16 %v785, %v781
      %v834 = vpack.c.b16 %v786, %v782
      %v835 = vpack.c.b16 %v787, %v783
      %v836 = vpack.c.b16 %v792, %v788
      %v837 = vpack.c.b16 %v793, %v789
      %v838 = vpack.c.b16 %v794, %v790
      %v839 = vpack.c.b16 %v795, %v791
      %v840 = vpack.c.b16 %v800, %v796
      %v841 = vpack.c.b16 %v801, %v797
      %v842 = vpack.c.b16 %v802, %v798
      %v843 = vpack.c.b16 %v803, %v799
      %vm884 = vcmask 261120
      %v886 = vsel %vm884, %v471, 0
      %v889 = vsel %vm884, %v487, 0
      %v892 = vsel %vm884, %v503, 0
      %v895 = vsel %vm884, %v519, 0
      %v898 = vsel %vm884, %v535, 0
      %v901 = vsel %vm884, %v551, 0
      %v904 = vsel %vm884, %v567, 0
      %v907 = vsel %vm884, %v603, 0
      %v910 = vsel %vm884, %v596, 0
      %912 = vmatprep.subr.bf16.mxu0 %v805
      %913 = vmatpush1.bf16.msra.mxu0 %v804
      %914 = vmatprep.subr.bf16.mxu0 %v809
      %915 = vmatpush1.bf16.msra.mxu0 %v808
      %916 = vmatprep.subr.bf16.mxu0 %v813
      %917 = vmatpush1.bf16.msra.mxu0 %v812
      %918 = vmatprep.subr.bf16.mxu0 %v817
      %919 = vmatpush1.bf16.msra.mxu0 %v816
      %920 = vmatprep.subr.bf16.mxu0 %v821
      %921 = vmatpush1.bf16.msra.mxu0 %v820
      %922 = vmatprep.subr.bf16.mxu0 %v825
      %923 = vmatpush1.bf16.msra.mxu0 %v824
      %924 = vmatprep.subr.bf16.mxu0 %v829
      %925 = vmatpush1.bf16.msra.mxu0 %v828
      %926 = vmatprep.subr.bf16.mxu0 %v833
      %927 = vmatpush1.bf16.msra.mxu0 %v832
      %928 = vmatprep.subr.bf16.mxu0 %v837
      %929 = vmatpush1.bf16.msra.mxu0 %v836
      %930 = vmatprep.subr.bf16.mxu0 %v841
      %931 = vmatpush1.bf16.msra.mxu0 %v840
      %932 = vmatprep.subr.bf16.mxu0 0
      %933 = vmatpush1.bf16.msra.mxu0 0
      %934 = vmatprep.subr.bf16.mxu0 0
      %935 = vmatpush1.bf16.msra.mxu0 0
      %936 = vmatprep.subr.bf16.mxu0 0
      %937 = vmatpush1.bf16.msra.mxu0 0
      %938 = vmatprep.subr.bf16.mxu0 0
      %939 = vmatpush1.bf16.msra.mxu0 0
      %940 = vmatprep.subr.bf16.mxu0 0
      %941 = vmatpush1.bf16.msra.mxu0 0
      %942 = vmatprep.subr.bf16.mxu0 0
      %943 = vmatpush1.bf16.msra.mxu0 0
      %944 = vmatprep.mubr.bf16.mxu0 %v886
      %945 = vmatmul.mubr.bf16.gmra.mrb[0].mxu0 %v459
      %v946 = vpop.f32.mrb[0].mxu0
      %v947 = vadd.f32 0.0, %v946
      %v948 = vpop.f32.mrb[0].mxu0
      %v949 = vadd.f32 0.0, %v948
      %v950 = vpop.f32.mrb[0].mxu0
      %v951 = vadd.f32 0.0, %v950
      %v952 = vpop.f32.mrb[0].mxu0
      %v953 = vadd.f32 0.0, %v952
      %954 = vmatprep.mubr.bf16.mxu0 %v889
      %955 = vmatmul.mubr.bf16.gmra.mrb[0].mxu0 %v479
      %v956 = vpop.f32.mrb[0].mxu0
      %v957 = vadd.f32 0.0, %v956
      %v958 = vpop.f32.mrb[0].mxu0
      %v959 = vadd.f32 0.0, %v958
      %v960 = vpop.f32.mrb[0].mxu0
      %v961 = vadd.f32 0.0, %v960
      %v962 = vpop.f32.mrb[0].mxu0
      %v963 = vadd.f32 0.0, %v962
      %964 = vmatprep.mubr.bf16.mxu0 %v892
      %965 = vmatmul.mubr.bf16.gmra.mrb[0].mxu0 %v495
      %v966 = vpop.f32.mrb[0].mxu0
      %v967 = vadd.f32 0.0, %v966
      %v968 = vpop.f32.mrb[0].mxu0
      %v969 = vadd.f32 0.0, %v968
      %v970 = vpop.f32.mrb[0].mxu0
      %v971 = vadd.f32 0.0, %v970
      %v972 = vpop.f32.mrb[0].mxu0
      %v973 = vadd.f32 0.0, %v972
      %974 = vmatprep.mubr.bf16.mxu0 %v895
      %975 = vmatmul.mubr.bf16.gmra.mrb[0].mxu0 %v511
      %v976 = vpop.f32.mrb[0].mxu0
      %v977 = vadd.f32 0.0, %v976
      %v978 = vpop.f32.mrb[0].mxu0
      %v979 = vadd.f32 0.0, %v978
      %v980 = vpop.f32.mrb[0].mxu0
      %v981 = vadd.f32 0.0, %v980
      %v982 = vpop.f32.mrb[0].mxu0
      %v983 = vadd.f32 0.0, %v982
      %984 = vmatprep.mubr.bf16.mxu0 %v898
      %985 = vmatmul.mubr.bf16.gmra.mrb[0].mxu0 %v527
      %v986 = vpop.f32.mrb[0].mxu0
      %v987 = vadd.f32 0.0, %v986
      %v988 = vpop.f32.mrb[0].mxu0
      %v989 = vadd.f32 0.0, %v988
      %v990 = vpop.f32.mrb[0].mxu0
      %v991 = vadd.f32 0.0, %v990
      %v992 = vpop.f32.mrb[0].mxu0
      %v993 = vadd.f32 0.0, %v992
      %994 = vmatprep.mubr.bf16.mxu0 %v901
      %995 = vmatmul.mubr.bf16.gmra.mrb[0].mxu0 %v543
      %v996 = vpop.f32.mrb[0].mxu0
      %v997 = vadd.f32 0.0, %v996
      %v998 = vpop.f32.mrb[0].mxu0
      %v999 = vadd.f32 0.0, %v998
      %v1000 = vpop.f32.mrb[0].mxu0
      %v1001 = vadd.f32 0.0, %v1000
      %v1002 = vpop.f32.mrb[0].mxu0
      %v1003 = vadd.f32 0.0, %v1002
      %1004 = vmatprep.mubr.bf16.mxu0 %v904
      %1005 = vmatmul.mubr.bf16.gmra.mrb[0].mxu0 %v559
      %v1006 = vpop.f32.mrb[0].mxu0
      %v1007 = vadd.f32 0.0, %v1006
      %v1008 = vpop.f32.mrb[0].mxu0
      %v1009 = vadd.f32 0.0, %v1008
      %v1010 = vpop.f32.mrb[0].mxu0
      %v1011 = vadd.f32 0.0, %v1010
      %v1012 = vpop.f32.mrb[0].mxu0
      %v1013 = vadd.f32 0.0, %v1012
      %1014 = vmatprep.mubr.bf16.mxu0 %v907
      %1015 = vmatmul.mubr.bf16.gmra.mrb[0].mxu0 %v602
      %v1016 = vpop.f32.mrb[0].mxu0
      %v1017 = vadd.f32 0.0, %v1016
      %v1018 = vpop.f32.mrb[0].mxu0
      %v1019 = vadd.f32 0.0, %v1018
      %v1020 = vpop.f32.mrb[0].mxu0
      %v1021 = vadd.f32 0.0, %v1020
      %v1022 = vpop.f32.mrb[0].mxu0
      %v1023 = vadd.f32 0.0, %v1022
      %1024 = vmatprep.mubr.bf16.mxu0 %v910
      %1025 = vmatmul.mubr.bf16.gmra.mrb[0].mxu0 %v593
      %v1026 = vpop.f32.mrb[0].mxu0
      %v1027 = vadd.f32 0.0, %v1026
      %v1028 = vpop.f32.mrb[0].mxu0
      %v1029 = vadd.f32 0.0, %v1028
      %v1030 = vpop.f32.mrb[0].mxu0
      %v1031 = vpop.f32.mrb[0].mxu0
      %1032 = vdwg.mxu0
      %1033 = vmatprep.subr.bf16.mxu0 %v807
      %1034 = vmatpush1.bf16.msra.mxu0 %v806
      %1035 = vmatprep.subr.bf16.mxu0 %v811
      %1036 = vmatpush1.bf16.msra.mxu0 %v810
      %1037 = vmatprep.subr.bf16.mxu0 %v815
      %1038 = vmatpush1.bf16.msra.mxu0 %v814
      %1039 = vmatprep.subr.bf16.mxu0 %v819
      %1040 = vmatpush1.bf16.msra.mxu0 %v818
      %1041 = vmatprep.subr.bf16.mxu0 %v823
      %1042 = vmatpush1.bf16.msra.mxu0 %v822
      %1043 = vmatprep.subr.bf16.mxu0 %v827
      %1044 = vmatpush1.bf16.msra.mxu0 %v826
      %1045 = vmatprep.subr.bf16.mxu0 %v831
      %1046 = vmatpush1.bf16.msra.mxu0 %v830
      %1047 = vmatprep.subr.bf16.mxu0 %v835
      %1048 = vmatpush1.bf16.msra.mxu0 %v834
      %1049 = vmatprep.subr.bf16.mxu0 %v839
      %1050 = vmatpush1.bf16.msra.mxu0 %v838
      %1051 = vmatprep.subr.bf16.mxu0 %v843
      %1052 = vmatpush1.bf16.msra.mxu0 %v842
      %1053 = vmatprep.subr.bf16.mxu0 0
      %1054 = vmatpush1.bf16.msra.mxu0 0
      %1055 = vmatprep.subr.bf16.mxu0 0
      %1056 = vmatpush1.bf16.msra.mxu0 0
      %1057 = vmatprep.subr.bf16.mxu0 0
      %1058 = vmatpush1.bf16.msra.mxu0 0
      %1059 = vmatprep.subr.bf16.mxu0 0
      %1060 = vmatpush1.bf16.msra.mxu0 0
      %1061 = vmatprep.subr.bf16.mxu0 0
      %1062 = vmatpush1.bf16.msra.mxu0 0
      %1063 = vmatprep.subr.bf16.mxu0 0
      %1064 = vmatpush1.bf16.msra.mxu0 0
      %1065 = vmatprep.mubr.bf16.mxu0 %v886
      %1066 = vmatmul.mubr.bf16.gmra.mrb[0].mxu0 %v459
      %v1067 = vpop.f32.mrb[0].mxu0
      %v1068 = vadd.f32 0.0, %v1067
      %v1069 = vpop.f32.mrb[0].mxu0
      %v1070 = vadd.f32 0.0, %v1069
      %v1071 = vpop.f32.mrb[0].mxu0
      %v1072 = vadd.f32 0.0, %v1071
      %v1073 = vpop.f32.mrb[0].mxu0
      %v1074 = vadd.f32 0.0, %v1073
      %1075 = vmatprep.mubr.bf16.mxu0 %v889
      %1076 = vmatmul.mubr.bf16.gmra.mrb[0].mxu0 %v479
      %v1077 = vpop.f32.mrb[0].mxu0
      %v1078 = vadd.f32 0.0, %v1077
      %v1079 = vpop.f32.mrb[0].mxu0
      %v1080 = vadd.f32 0.0, %v1079
      %v1081 = vpop.f32.mrb[0].mxu0
      %v1082 = vadd.f32 0.0, %v1081
      %v1083 = vpop.f32.mrb[0].mxu0
      %v1084 = vadd.f32 0.0, %v1083
      %1085 = vmatprep.mubr.bf16.mxu0 %v892
      %1086 = vmatmul.mubr.bf16.gmra.mrb[0].mxu0 %v495
      %v1087 = vpop.f32.mrb[0].mxu0
      %v1088 = vadd.f32 0.0, %v1087
      %v1089 = vpop.f32.mrb[0].mxu0
      %v1090 = vadd.f32 0.0, %v1089
      %v1091 = vpop.f32.mrb[0].mxu0
      %v1092 = vadd.f32 0.0, %v1091
      %v1093 = vpop.f32.mrb[0].mxu0
      %v1094 = vadd.f32 0.0, %v1093
      %1095 = vmatprep.mubr.bf16.mxu0 %v895
      %1096 = vmatmul.mubr.bf16.gmra.mrb[0].mxu0 %v511
      %v1097 = vpop.f32.mrb[0].mxu0
      %v1098 = vadd.f32 0.0, %v1097
      %v1099 = vpop.f32.mrb[0].mxu0
      %v1100 = vadd.f32 0.0, %v1099
      %v1101 = vpop.f32.mrb[0].mxu0
      %v1102 = vadd.f32 0.0, %v1101
      %v1103 = vpop.f32.mrb[0].mxu0
      %v1104 = vadd.f32 0.0, %v1103
      %1105 = vmatprep.mubr.bf16.mxu0 %v898
      %1106 = vmatmul.mubr.bf16.gmra.mrb[0].mxu0 %v527
      %v1107 = vpop.f32.mrb[0].mxu0
      %v1108 = vadd.f32 0.0, %v1107
      %v1109 = vpop.f32.mrb[0].mxu0
      %v1110 = vadd.f32 0.0, %v1109
      %v1111 = vpop.f32.mrb[0].mxu0
      %v1112 = vadd.f32 0.0, %v1111
      %v1113 = vpop.f32.mrb[0].mxu0
      %v1114 = vadd.f32 0.0, %v1113
      %1115 = vmatprep.mubr.bf16.mxu0 %v901
      %1116 = vmatmul.mubr.bf16.gmra.mrb[0].mxu0 %v543
      %v1117 = vpop.f32.mrb[0].mxu0
      %v1118 = vadd.f32 0.0, %v1117
      %v1119 = vpop.f32.mrb[0].mxu0
      %v1120 = vadd.f32 0.0, %v1119
      %v1121 = vpop.f32.mrb[0].mxu0
      %v1122 = vadd.f32 0.0, %v1121
      %v1123 = vpop.f32.mrb[0].mxu0
      %v1124 = vadd.f32 0.0, %v1123
      %1125 = vmatprep.mubr.bf16.mxu0 %v904
      %1126 = vmatmul.mubr.bf16.gmra.mrb[0].mxu0 %v559
      %v1127 = vpop.f32.mrb[0].mxu0
      %v1128 = vadd.f32 0.0, %v1127
      %v1129 = vpop.f32.mrb[0].mxu0
      %v1130 = vadd.f32 0.0, %v1129
      %v1131 = vpop.f32.mrb[0].mxu0
      %v1132 = vadd.f32 0.0, %v1131
      %v1133 = vpop.f32.mrb[0].mxu0
      %v1134 = vadd.f32 0.0, %v1133
      %1135 = vmatprep.mubr.bf16.mxu0 %v907
      %1136 = vmatmul.mubr.bf16.gmra.mrb[0].mxu0 %v602
      %v1137 = vpop.f32.mrb[0].mxu0
      %v1138 = vadd.f32 0.0, %v1137
      %v1139 = vpop.f32.mrb[0].mxu0
      %v1140 = vadd.f32 0.0, %v1139
      %v1141 = vpop.f32.mrb[0].mxu0
      %v1142 = vadd.f32 0.0, %v1141
      %v1143 = vpop.f32.mrb[0].mxu0
      %v1144 = vadd.f32 0.0, %v1143
      %1145 = vmatprep.mubr.bf16.mxu0 %v910
      %1146 = vmatmul.mubr.bf16.gmra.mrb[0].mxu0 %v593
      %v1147 = vpop.f32.mrb[0].mxu0
      %v1148 = vadd.f32 0.0, %v1147
      %v1149 = vpop.f32.mrb[0].mxu0
      %v1150 = vadd.f32 0.0, %v1149
      %v1151 = vpop.f32.mrb[0].mxu0
      %v1152 = vpop.f32.mrb[0].mxu0
      %1153 = vdwg.mxu0
      %v1194 = vunpack.c.l.b16 %v604
      %v1195 = vunpack.c.h.b16 %v604
      %v1196 = vunpack.c.l.b16 %v605
      %v1197 = vunpack.c.h.b16 %v605
      %v1198 = vunpack.c.l.b16 %v606
      %v1199 = vunpack.c.h.b16 %v606
      %v1200 = vunpack.c.l.b16 %v607
      %v1201 = vunpack.c.h.b16 %v607
      %v1202 = vunpack.c.l.b16 %v608
      %v1203 = vunpack.c.h.b16 %v608
      %v1204 = vunpack.c.l.b16 %v609
      %v1205 = vunpack.c.h.b16 %v609
      %v1206 = vunpack.c.l.b16 %v610
      %v1207 = vunpack.c.h.b16 %v610
      %v1208 = vunpack.c.l.b16 %v611
      %v1209 = vunpack.c.h.b16 %v611
      %v1210 = vunpack.c.l.b16 %v612
      %v1211 = vunpack.c.h.b16 %v612
      %v1212 = vunpack.c.l.b16 %v613
      %v1213 = vunpack.c.h.b16 %v613
      %v1214 = vunpack.c.l.b16 %v614
      %v1215 = vunpack.c.h.b16 %v614
      %v1216 = vunpack.c.l.b16 %v615
      %v1217 = vunpack.c.h.b16 %v615
      %v1218 = vunpack.c.l.b16 %v616
      %v1219 = vunpack.c.h.b16 %v616
      %v1220 = vunpack.c.l.b16 %v617
      %v1221 = vunpack.c.h.b16 %v617
      %v1222 = vunpack.c.l.b16 %v618
      %v1223 = vunpack.c.h.b16 %v618
      %v1224 = vunpack.c.l.b16 %v619
      %v1225 = vunpack.c.h.b16 %v619
      %v1226 = vunpack.c.l.b16 %v620
      %v1227 = vunpack.c.h.b16 %v620
      %v1228 = vunpack.c.l.b16 %v621
      %v1229 = vunpack.c.h.b16 %v621
      %v1230 = vunpack.c.l.b16 %v622
      %v1231 = vunpack.c.h.b16 %v622
      %v1232 = vunpack.c.l.b16 %v623
      %v1233 = vunpack.c.h.b16 %v623
      %v1234 = vunpack.c.l.b16 %v624
      %v1235 = vunpack.c.h.b16 %v624
      %v1236 = vunpack.c.l.b16 %v625
      %v1237 = vunpack.c.h.b16 %v625
      %v1238 = vunpack.c.l.b16 %v626
      %v1239 = vunpack.c.h.b16 %v626
      %v1240 = vunpack.c.l.b16 %v627
      %v1241 = vunpack.c.h.b16 %v627
      %v1242 = vunpack.c.l.b16 %v628
      %v1243 = vunpack.c.h.b16 %v628
      %v1244 = vunpack.c.l.b16 %v629
      %v1245 = vunpack.c.h.b16 %v629
      %v1246 = vunpack.c.l.b16 %v630
      %v1247 = vunpack.c.h.b16 %v630
      %v1248 = vunpack.c.l.b16 %v631
      %v1249 = vunpack.c.h.b16 %v631
      %v1250 = vunpack.c.l.b16 %v632
      %v1251 = vunpack.c.h.b16 %v632
      %v1252 = vunpack.c.l.b16 %v633
      %v1253 = vunpack.c.h.b16 %v633
      %v1254 = vunpack.c.l.b16 %v634
      %v1255 = vunpack.c.h.b16 %v634
      %v1256 = vunpack.c.l.b16 %v635
      %v1257 = vunpack.c.h.b16 %v635
      %v1258 = vunpack.c.l.b16 %v636
      %v1259 = vunpack.c.h.b16 %v636
      %v1260 = vunpack.c.l.b16 %v637
      %v1261 = vunpack.c.h.b16 %v637
      %v1262 = vunpack.c.l.b16 %v638
      %v1263 = vunpack.c.h.b16 %v638
      %v1264 = vunpack.c.l.b16 %v639
      %v1265 = vunpack.c.h.b16 %v639
      %v1266 = vunpack.c.l.b16 %v640
      %v1267 = vunpack.c.h.b16 %v640
      %v1268 = vunpack.c.l.b16 %v641
      %v1269 = vunpack.c.h.b16 %v641
      %v1270 = vunpack.c.l.b16 %v642
      %v1271 = vunpack.c.h.b16 %v642
      %v1272 = vunpack.c.l.b16 %v643
      %v1273 = vunpack.c.h.b16 %v643
      %v1274 = vpack.c.b16 %v1198, %v1194
      %v1275 = vpack.c.b16 %v1199, %v1195
      %v1276 = vpack.c.b16 %v1200, %v1196
      %v1277 = vpack.c.b16 %v1201, %v1197
      %v1278 = vpack.c.b16 %v1206, %v1202
      %v1279 = vpack.c.b16 %v1207, %v1203
      %v1280 = vpack.c.b16 %v1208, %v1204
      %v1281 = vpack.c.b16 %v1209, %v1205
      %v1282 = vpack.c.b16 %v1214, %v1210
      %v1283 = vpack.c.b16 %v1215, %v1211
      %v1284 = vpack.c.b16 %v1216, %v1212
      %v1285 = vpack.c.b16 %v1217, %v1213
      %v1286 = vpack.c.b16 %v1222, %v1218
      %v1287 = vpack.c.b16 %v1223, %v1219
      %v1288 = vpack.c.b16 %v1224, %v1220
      %v1289 = vpack.c.b16 %v1225, %v1221
      %v1290 = vpack.c.b16 %v1230, %v1226
      %v1291 = vpack.c.b16 %v1231, %v1227
      %v1292 = vpack.c.b16 %v1232, %v1228
      %v1293 = vpack.c.b16 %v1233, %v1229
      %v1294 = vpack.c.b16 %v1238, %v1234
      %v1295 = vpack.c.b16 %v1239, %v1235
      %v1296 = vpack.c.b16 %v1240, %v1236
      %v1297 = vpack.c.b16 %v1241, %v1237
      %v1298 = vpack.c.b16 %v1246, %v1242
      %v1299 = vpack.c.b16 %v1247, %v1243
      %v1300 = vpack.c.b16 %v1248, %v1244
      %v1301 = vpack.c.b16 %v1249, %v1245
      %v1302 = vpack.c.b16 %v1254, %v1250
      %v1303 = vpack.c.b16 %v1255, %v1251
      %v1304 = vpack.c.b16 %v1256, %v1252
      %v1305 = vpack.c.b16 %v1257, %v1253
      %v1306 = vpack.c.b16 %v1262, %v1258
      %v1307 = vpack.c.b16 %v1263, %v1259
      %v1308 = vpack.c.b16 %v1264, %v1260
      %v1309 = vpack.c.b16 %v1265, %v1261
      %v1310 = vpack.c.b16 %v1270, %v1266
      %v1311 = vpack.c.b16 %v1271, %v1267
      %v1312 = vpack.c.b16 %v1272, %v1268
      %v1313 = vpack.c.b16 %v1273, %v1269
      %v1354 = vsel %vm884, %v418, 0
      %v1356 = vsel %vm884, %v420, 0
      %v1358 = vsel %vm884, %v422, 0
      %v1360 = vsel %vm884, %v424, 0
      %v1362 = vsel %vm884, %v426, 0
      %v1364 = vsel %vm884, %v428, 0
      %v1366 = vsel %vm884, %v430, 0
      %v1368 = vsel %vm884, %v432, 0
      %v1370 = vsel %vm884, %v445, 0
      %1372 = vmatprep.subr.bf16.mxu0 %v1275
      %1373 = vmatpush1.bf16.msra.mxu0 %v1274
      %1374 = vmatprep.subr.bf16.mxu0 %v1279
      %1375 = vmatpush1.bf16.msra.mxu0 %v1278
      %1376 = vmatprep.subr.bf16.mxu0 %v1283
      %1377 = vmatpush1.bf16.msra.mxu0 %v1282
      %1378 = vmatprep.subr.bf16.mxu0 %v1287
      %1379 = vmatpush1.bf16.msra.mxu0 %v1286
      %1380 = vmatprep.subr.bf16.mxu0 %v1291
      %1381 = vmatpush1.bf16.msra.mxu0 %v1290
      %1382 = vmatprep.subr.bf16.mxu0 %v1295
      %1383 = vmatpush1.bf16.msra.mxu0 %v1294
      %1384 = vmatprep.subr.bf16.mxu0 %v1299
      %1385 = vmatpush1.bf16.msra.mxu0 %v1298
      %1386 = vmatprep.subr.bf16.mxu0 %v1303
      %1387 = vmatpush1.bf16.msra.mxu0 %v1302
      %1388 = vmatprep.subr.bf16.mxu0 %v1307
      %1389 = vmatpush1.bf16.msra.mxu0 %v1306
      %1390 = vmatprep.subr.bf16.mxu0 %v1311
      %1391 = vmatpush1.bf16.msra.mxu0 %v1310
      %1392 = vmatprep.subr.bf16.mxu0 0
      %1393 = vmatpush1.bf16.msra.mxu0 0
      %1394 = vmatprep.subr.bf16.mxu0 0
      %1395 = vmatpush1.bf16.msra.mxu0 0
      %1396 = vmatprep.subr.bf16.mxu0 0
      %1397 = vmatpush1.bf16.msra.mxu0 0
      %1398 = vmatprep.subr.bf16.mxu0 0
      %1399 = vmatpush1.bf16.msra.mxu0 0
      %1400 = vmatprep.subr.bf16.mxu0 0
      %1401 = vmatpush1.bf16.msra.mxu0 0
      %1402 = vmatprep.subr.bf16.mxu0 0
      %1403 = vmatpush1.bf16.msra.mxu0 0
      %1404 = vmatprep.mubr.bf16.mxu0 %v1354
      %1405 = vmatmul.mubr.bf16.gmra.mrb[0].mxu0 %v417
      %v1406 = vpop.f32.mrb[0].mxu0
      %v1407 = vadd.f32 %v947, %v1406
      %v1408 = vpop.f32.mrb[0].mxu0
      %v1409 = vadd.f32 %v949, %v1408
      %v1410 = vpop.f32.mrb[0].mxu0
      %v1411 = vadd.f32 %v951, %v1410
      %v1412 = vpop.f32.mrb[0].mxu0
      %v1413 = vadd.f32 %v953, %v1412
      %1414 = vmatprep.mubr.bf16.mxu0 %v1356
      %1415 = vmatmul.mubr.bf16.gmra.mrb[0].mxu0 %v419
      %v1416 = vpop.f32.mrb[0].mxu0
      %v1417 = vadd.f32 %v957, %v1416
      %v1418 = vpop.f32.mrb[0].mxu0
      %v1419 = vadd.f32 %v959, %v1418
      %v1420 = vpop.f32.mrb[0].mxu0
      %v1421 = vadd.f32 %v961, %v1420
      %v1422 = vpop.f32.mrb[0].mxu0
      %v1423 = vadd.f32 %v963, %v1422
      %1424 = vmatprep.mubr.bf16.mxu0 %v1358
      %1425 = vmatmul.mubr.bf16.gmra.mrb[0].mxu0 %v421
      %v1426 = vpop.f32.mrb[0].mxu0
      %v1427 = vadd.f32 %v967, %v1426
      %v1428 = vpop.f32.mrb[0].mxu0
      %v1429 = vadd.f32 %v969, %v1428
      %v1430 = vpop.f32.mrb[0].mxu0
      %v1431 = vadd.f32 %v971, %v1430
      %v1432 = vpop.f32.mrb[0].mxu0
      %v1433 = vadd.f32 %v973, %v1432
      %1434 = vmatprep.mubr.bf16.mxu0 %v1360
      %1435 = vmatmul.mubr.bf16.gmra.mrb[0].mxu0 %v423
      %v1436 = vpop.f32.mrb[0].mxu0
      %v1437 = vadd.f32 %v977, %v1436
      %v1438 = vpop.f32.mrb[0].mxu0
      %v1439 = vadd.f32 %v979, %v1438
      %v1440 = vpop.f32.mrb[0].mxu0
      %v1441 = vadd.f32 %v981, %v1440
      %v1442 = vpop.f32.mrb[0].mxu0
      %v1443 = vadd.f32 %v983, %v1442
      %1444 = vmatprep.mubr.bf16.mxu0 %v1362
      %1445 = vmatmul.mubr.bf16.gmra.mrb[0].mxu0 %v425
      %v1446 = vpop.f32.mrb[0].mxu0
      %v1447 = vadd.f32 %v987, %v1446
      %v1448 = vpop.f32.mrb[0].mxu0
      %v1449 = vadd.f32 %v989, %v1448
      %v1450 = vpop.f32.mrb[0].mxu0
      %v1451 = vadd.f32 %v991, %v1450
      %v1452 = vpop.f32.mrb[0].mxu0
      %v1453 = vadd.f32 %v993, %v1452
      %1454 = vmatprep.mubr.bf16.mxu0 %v1364
      %1455 = vmatmul.mubr.bf16.gmra.mrb[0].mxu0 %v427
      %v1456 = vpop.f32.mrb[0].mxu0
      %v1457 = vadd.f32 %v997, %v1456
      %v1458 = vpop.f32.mrb[0].mxu0
      %v1459 = vadd.f32 %v999, %v1458
      %v1460 = vpop.f32.mrb[0].mxu0
      %v1461 = vadd.f32 %v1001, %v1460
      %v1462 = vpop.f32.mrb[0].mxu0
      %v1463 = vadd.f32 %v1003, %v1462
      %1464 = vmatprep.mubr.bf16.mxu0 %v1366
      %1465 = vmatmul.mubr.bf16.gmra.mrb[0].mxu0 %v429
      %v1466 = vpop.f32.mrb[0].mxu0
      %v1467 = vadd.f32 %v1007, %v1466
      %v1468 = vpop.f32.mrb[0].mxu0
      %v1469 = vadd.f32 %v1009, %v1468
      %v1470 = vpop.f32.mrb[0].mxu0
      %v1471 = vadd.f32 %v1011, %v1470
      %v1472 = vpop.f32.mrb[0].mxu0
      %v1473 = vadd.f32 %v1013, %v1472
      %1474 = vmatprep.mubr.bf16.mxu0 %v1368
      %1475 = vmatmul.mubr.bf16.gmra.mrb[0].mxu0 %v431
      %v1476 = vpop.f32.mrb[0].mxu0
      %v1477 = vadd.f32 %v1017, %v1476
      %v1478 = vpop.f32.mrb[0].mxu0
      %v1479 = vadd.f32 %v1019, %v1478
      %v1480 = vpop.f32.mrb[0].mxu0
      %v1481 = vadd.f32 %v1021, %v1480
      %v1482 = vpop.f32.mrb[0].mxu0
      %v1483 = vadd.f32 %v1023, %v1482
      %1484 = vmatprep.mubr.bf16.mxu0 %v1370
      %1485 = vmatmul.mubr.bf16.gmra.mrb[0].mxu0 %v444
      %v1486 = vpop.f32.mrb[0].mxu0
      %v1487 = vadd.f32 %v1027, %v1486
      %v1488 = vpop.f32.mrb[0].mxu0
      %v1489 = vadd.f32 %v1029, %v1488
      %v1490 = vpop.f32.mrb[0].mxu0
      %v1491 = vpop.f32.mrb[0].mxu0
      %1492 = vdwg.mxu0
      %1493 = vmatprep.subr.bf16.mxu0 %v1277
      %1494 = vmatpush1.bf16.msra.mxu0 %v1276
      %1495 = vmatprep.subr.bf16.mxu0 %v1281
      %1496 = vmatpush1.bf16.msra.mxu0 %v1280
      %1497 = vmatprep.subr.bf16.mxu0 %v1285
      %1498 = vmatpush1.bf16.msra.mxu0 %v1284
      %1499 = vmatprep.subr.bf16.mxu0 %v1289
      %1500 = vmatpush1.bf16.msra.mxu0 %v1288
      %1501 = vmatprep.subr.bf16.mxu0 %v1293
      %1502 = vmatpush1.bf16.msra.mxu0 %v1292
      %1503 = vmatprep.subr.bf16.mxu0 %v1297
      %1504 = vmatpush1.bf16.msra.mxu0 %v1296
      %1505 = vmatprep.subr.bf16.mxu0 %v1301
      %1506 = vmatpush1.bf16.msra.mxu0 %v1300
      %1507 = vmatprep.subr.bf16.mxu0 %v1305
      %1508 = vmatpush1.bf16.msra.mxu0 %v1304
      %1509 = vmatprep.subr.bf16.mxu0 %v1309
      %1510 = vmatpush1.bf16.msra.mxu0 %v1308
      %1511 = vmatprep.subr.bf16.mxu0 %v1313
      %1512 = vmatpush1.bf16.msra.mxu0 %v1312
      %1513 = vmatprep.subr.bf16.mxu0 0
      %1514 = vmatpush1.bf16.msra.mxu0 0
      %1515 = vmatprep.subr.bf16.mxu0 0
      %1516 = vmatpush1.bf16.msra.mxu0 0
      %1517 = vmatprep.subr.bf16.mxu0 0
      %1518 = vmatpush1.bf16.msra.mxu0 0
      %1519 = vmatprep.subr.bf16.mxu0 0
      %1520 = vmatpush1.bf16.msra.mxu0 0
      %1521 = vmatprep.subr.bf16.mxu0 0
      %1522 = vmatpush1.bf16.msra.mxu0 0
      %1523 = vmatprep.subr.bf16.mxu0 0
      %1524 = vmatpush1.bf16.msra.mxu0 0
      %1525 = vmatprep.mubr.bf16.mxu0 %v1354
      %1526 = vmatmul.mubr.bf16.gmra.mrb[0].mxu0 %v417
      %v1527 = vpop.f32.mrb[0].mxu0
      %v1528 = vadd.f32 %v1068, %v1527
      %v1529 = vpop.f32.mrb[0].mxu0
      %v1530 = vadd.f32 %v1070, %v1529
      %v1531 = vpop.f32.mrb[0].mxu0
      %v1532 = vadd.f32 %v1072, %v1531
      %v1533 = vpop.f32.mrb[0].mxu0
      %v1534 = vadd.f32 %v1074, %v1533
      %1535 = vmatprep.mubr.bf16.mxu0 %v1356
      %1536 = vmatmul.mubr.bf16.gmra.mrb[0].mxu0 %v419
      %v1537 = vpop.f32.mrb[0].mxu0
      %v1538 = vadd.f32 %v1078, %v1537
      %v1539 = vpop.f32.mrb[0].mxu0
      %v1540 = vadd.f32 %v1080, %v1539
      %v1541 = vpop.f32.mrb[0].mxu0
      %v1542 = vadd.f32 %v1082, %v1541
      %v1543 = vpop.f32.mrb[0].mxu0
      %v1544 = vadd.f32 %v1084, %v1543
      %1545 = vmatprep.mubr.bf16.mxu0 %v1358
      %1546 = vmatmul.mubr.bf16.gmra.mrb[0].mxu0 %v421
      %v1547 = vpop.f32.mrb[0].mxu0
      %v1548 = vadd.f32 %v1088, %v1547
      %v1549 = vpop.f32.mrb[0].mxu0
      %v1550 = vadd.f32 %v1090, %v1549
      %v1551 = vpop.f32.mrb[0].mxu0
      %v1552 = vadd.f32 %v1092, %v1551
      %v1553 = vpop.f32.mrb[0].mxu0
      %v1554 = vadd.f32 %v1094, %v1553
      %1555 = vmatprep.mubr.bf16.mxu0 %v1360
      %1556 = vmatmul.mubr.bf16.gmra.mrb[0].mxu0 %v423
      %v1557 = vpop.f32.mrb[0].mxu0
      %v1558 = vadd.f32 %v1098, %v1557
      %v1559 = vpop.f32.mrb[0].mxu0
      %v1560 = vadd.f32 %v1100, %v1559
      %v1561 = vpop.f32.mrb[0].mxu0
      %v1562 = vadd.f32 %v1102, %v1561
      %v1563 = vpop.f32.mrb[0].mxu0
      %v1564 = vadd.f32 %v1104, %v1563
      %1565 = vmatprep.mubr.bf16.mxu0 %v1362
      %1566 = vmatmul.mubr.bf16.gmra.mrb[0].mxu0 %v425
      %v1567 = vpop.f32.mrb[0].mxu0
      %v1568 = vadd.f32 %v1108, %v1567
      %v1569 = vpop.f32.mrb[0].mxu0
      %v1570 = vadd.f32 %v1110, %v1569
      %v1571 = vpop.f32.mrb[0].mxu0
      %v1572 = vadd.f32 %v1112, %v1571
      %v1573 = vpop.f32.mrb[0].mxu0
      %v1574 = vadd.f32 %v1114, %v1573
      %1575 = vmatprep.mubr.bf16.mxu0 %v1364
      %1576 = vmatmul.mubr.bf16.gmra.mrb[0].mxu0 %v427
      %v1577 = vpop.f32.mrb[0].mxu0
      %v1578 = vadd.f32 %v1118, %v1577
      %v1579 = vpop.f32.mrb[0].mxu0
      %v1580 = vadd.f32 %v1120, %v1579
      %v1581 = vpop.f32.mrb[0].mxu0
      %v1582 = vadd.f32 %v1122, %v1581
      %v1583 = vpop.f32.mrb[0].mxu0
      %v1584 = vadd.f32 %v1124, %v1583
      %1585 = vmatprep.mubr.bf16.mxu0 %v1366
      %1586 = vmatmul.mubr.bf16.gmra.mrb[0].mxu0 %v429
      %v1587 = vpop.f32.mrb[0].mxu0
      %v1588 = vadd.f32 %v1128, %v1587
      %v1589 = vpop.f32.mrb[0].mxu0
      %v1590 = vadd.f32 %v1130, %v1589
      %v1591 = vpop.f32.mrb[0].mxu0
      %v1592 = vadd.f32 %v1132, %v1591
      %v1593 = vpop.f32.mrb[0].mxu0
      %v1594 = vadd.f32 %v1134, %v1593
      %1595 = vmatprep.mubr.bf16.mxu0 %v1368
      %1596 = vmatmul.mubr.bf16.gmra.mrb[0].mxu0 %v431
      %v1597 = vpop.f32.mrb[0].mxu0
      %v1598 = vadd.f32 %v1138, %v1597
      %v1599 = vpop.f32.mrb[0].mxu0
      %v1600 = vadd.f32 %v1140, %v1599
      %v1601 = vpop.f32.mrb[0].mxu0
      %v1602 = vadd.f32 %v1142, %v1601
      %v1603 = vpop.f32.mrb[0].mxu0
      %v1604 = vadd.f32 %v1144, %v1603
      %1605 = vmatprep.mubr.bf16.mxu0 %v1370
      %1606 = vmatmul.mubr.bf16.gmra.mrb[0].mxu0 %v444
      %v1607 = vpop.f32.mrb[0].mxu0
      %v1608 = vadd.f32 %v1148, %v1607
      %v1609 = vpop.f32.mrb[0].mxu0
      %v1610 = vadd.f32 %v1150, %v1609
      %v1611 = vpop.f32.mrb[0].mxu0
      %v1612 = vpop.f32.mrb[0].mxu0
      %1613 = vdwg.mxu0
      %v1614 = vmul.f32 %v1407, %v1407
      %v1615 = vmul.f32 %v1409, %v1409
      %v1616 = vmul.f32 %v1411, %v1411
      %v1617 = vmul.f32 %v1413, %v1413
      %v1618 = vmul.f32 %v1417, %v1417
      %v1619 = vmul.f32 %v1419, %v1419
      %v1620 = vmul.f32 %v1421, %v1421
      %v1621 = vmul.f32 %v1423, %v1423
      %v1622 = vmul.f32 %v1427, %v1427
      %v1623 = vmul.f32 %v1429, %v1429
      %v1624 = vmul.f32 %v1431, %v1431
      %v1625 = vmul.f32 %v1433, %v1433
      %v1626 = vmul.f32 %v1437, %v1437
      %v1627 = vmul.f32 %v1439, %v1439
      %v1628 = vmul.f32 %v1441, %v1441
      %v1629 = vmul.f32 %v1443, %v1443
      %v1630 = vmul.f32 %v1447, %v1447
      %v1631 = vmul.f32 %v1449, %v1449
      %v1632 = vmul.f32 %v1451, %v1451
      %v1633 = vmul.f32 %v1453, %v1453
      %v1634 = vmul.f32 %v1457, %v1457
      %v1635 = vmul.f32 %v1459, %v1459
      %v1636 = vmul.f32 %v1461, %v1461
      %v1637 = vmul.f32 %v1463, %v1463
      %v1638 = vmul.f32 %v1467, %v1467
      %v1639 = vmul.f32 %v1469, %v1469
      %v1640 = vmul.f32 %v1471, %v1471
      %v1641 = vmul.f32 %v1473, %v1473
      %v1642 = vmul.f32 %v1477, %v1477
      %v1643 = vmul.f32 %v1479, %v1479
      %v1644 = vmul.f32 %v1481, %v1481
      %v1645 = vmul.f32 %v1483, %v1483
      %v1646 = vmul.f32 %v1487, %v1487
      %v1647 = vmul.f32 %v1489, %v1489
      %v1648 = vmul.f32 %v1528, %v1528
      %v1649 = vmul.f32 %v1530, %v1530
      %v1650 = vmul.f32 %v1532, %v1532
      %v1651 = vmul.f32 %v1534, %v1534
      %v1652 = vmul.f32 %v1538, %v1538
      %v1653 = vmul.f32 %v1540, %v1540
      %v1654 = vmul.f32 %v1542, %v1542
      %v1655 = vmul.f32 %v1544, %v1544
      %v1656 = vmul.f32 %v1548, %v1548
      %v1657 = vmul.f32 %v1550, %v1550
      %v1658 = vmul.f32 %v1552, %v1552
      %v1659 = vmul.f32 %v1554, %v1554
      %v1660 = vmul.f32 %v1558, %v1558
      %v1661 = vmul.f32 %v1560, %v1560
      %v1662 = vmul.f32 %v1562, %v1562
      %v1663 = vmul.f32 %v1564, %v1564
      %v1664 = vmul.f32 %v1568, %v1568
      %v1665 = vmul.f32 %v1570, %v1570
      %v1666 = vmul.f32 %v1572, %v1572
      %v1667 = vmul.f32 %v1574, %v1574
      %v1668 = vmul.f32 %v1578, %v1578
      %v1669 = vmul.f32 %v1580, %v1580
      %v1670 = vmul.f32 %v1582, %v1582
      %v1671 = vmul.f32 %v1584, %v1584
      %v1672 = vmul.f32 %v1588, %v1588
      %v1673 = vmul.f32 %v1590, %v1590
      %v1674 = vmul.f32 %v1592, %v1592
      %v1675 = vmul.f32 %v1594, %v1594
      %v1676 = vmul.f32 %v1598, %v1598
      %v1677 = vmul.f32 %v1600, %v1600
      %v1678 = vmul.f32 %v1602, %v1602
      %v1679 = vmul.f32 %v1604, %v1604
      %v1680 = vmul.f32 %v1608, %v1608
      %v1681 = vmul.f32 %v1610, %v1610
      %v1682 = vadd.f32 %v1614, %v1648
      %v1683 = vadd.f32 %v1615, %v1649
      %v1684 = vadd.f32 %v1616, %v1650
      %v1685 = vadd.f32 %v1617, %v1651
      %v1686 = vadd.f32 %v1618, %v1652
      %v1687 = vadd.f32 %v1619, %v1653
      %v1688 = vadd.f32 %v1620, %v1654
      %v1689 = vadd.f32 %v1621, %v1655
      %v1690 = vadd.f32 %v1622, %v1656
      %v1691 = vadd.f32 %v1623, %v1657
      %v1692 = vadd.f32 %v1624, %v1658
      %v1693 = vadd.f32 %v1625, %v1659
      %v1694 = vadd.f32 %v1626, %v1660
      %v1695 = vadd.f32 %v1627, %v1661
      %v1696 = vadd.f32 %v1628, %v1662
      %v1697 = vadd.f32 %v1629, %v1663
      %v1698 = vadd.f32 %v1630, %v1664
      %v1699 = vadd.f32 %v1631, %v1665
      %v1700 = vadd.f32 %v1632, %v1666
      %v1701 = vadd.f32 %v1633, %v1667
      %v1702 = vadd.f32 %v1634, %v1668
      %v1703 = vadd.f32 %v1635, %v1669
      %v1704 = vadd.f32 %v1636, %v1670
      %v1705 = vadd.f32 %v1637, %v1671
      %v1706 = vadd.f32 %v1638, %v1672
      %v1707 = vadd.f32 %v1639, %v1673
      %v1708 = vadd.f32 %v1640, %v1674
      %v1709 = vadd.f32 %v1641, %v1675
      %v1710 = vadd.f32 %v1642, %v1676
      %v1711 = vadd.f32 %v1643, %v1677
      %v1712 = vadd.f32 %v1644, %v1678
      %v1713 = vadd.f32 %v1645, %v1679
      %v1714 = vadd.f32 %v1646, %v1680
      %v1715 = vadd.f32 %v1647, %v1681
      %v1716 = vpack.c.bf16 %v1684, %v1682
      %v1717 = vpack.c.bf16 %v1685, %v1683
      %v1718 = vpack.c.bf16 %v1688, %v1686
      %v1719 = vpack.c.bf16 %v1689, %v1687
      %v1720 = vpack.c.bf16 %v1692, %v1690
      %v1721 = vpack.c.bf16 %v1693, %v1691
      %v1722 = vpack.c.bf16 %v1696, %v1694
      %v1723 = vpack.c.bf16 %v1697, %v1695
      %v1724 = vpack.c.bf16 %v1700, %v1698
      %v1725 = vpack.c.bf16 %v1701, %v1699
      %v1726 = vpack.c.bf16 %v1704, %v1702
      %v1727 = vpack.c.bf16 %v1705, %v1703
      %v1728 = vpack.c.bf16 %v1708, %v1706
      %v1729 = vpack.c.bf16 %v1709, %v1707
      %v1730 = vpack.c.bf16 %v1712, %v1710
      %v1731 = vpack.c.bf16 %v1713, %v1711
      %v1732 = vpack.c.bf16 %v1714, %v1714
      %v1733 = vpack.c.bf16 %v1715, %v1715
      %v1734 = vld [vmem:[%s4] sm:$0xf]
      %v1735 = vld [vmem:[%s4 + $0x4] sm:$0xf]
      %v1736 = vld [vmem:[%s4 + $0x8] sm:$0xf]
      %v1737 = vld [vmem:[%s4 + $0xc] sm:$0xf]
      %v1738 = vld [vmem:[%s4 + $0x10] sm:$0xf]
      %v1739 = vld [vmem:[%s4 + $0x14] sm:$0xf]
      %v1740 = vld [vmem:[%s4 + $0x18] sm:$0xf]
      %v1741 = vld [vmem:[%s4 + $0x1c] sm:$0xf]
      %v1742 = vld [vmem:[%s4 + $0x20] sm:$0xf]
      %v1743 = vld [vmem:[%s4 + $0x24] sm:$0xf]
      %v1744 = vld [vmem:[%s4 + $0x28] sm:$0xf]
      %v1745 = vld [vmem:[%s4 + $0x2c] sm:$0xf]
      %v1746 = vld [vmem:[%s4 + $0x30] sm:$0xf]
      %v1747 = vld [vmem:[%s4 + $0x34] sm:$0xf]
      %v1748 = vld [vmem:[%s4 + $0x38] sm:$0xf]
      %v1749 = vld [vmem:[%s4 + $0x3c] sm:$0xf]
      %v1750 = vld [vmem:[%s4 + $0x40] sm:$0xf]
      %v1751 = vld [vmem:[%s4 + $0x44] sm:$0xf]
      %v1752 = vld [vmem:[%s4 + $0x48] sm:$0xf]
      %v1753 = vld [vmem:[%s4 + $0x4c] sm:$0xf]
      %v1754 = vld [vmem:[%s4 + $0x50] sm:$0xf]
      %v1755 = vld [vmem:[%s4 + $0x54] sm:$0xf]
      %v1756 = vld [vmem:[%s4 + $0x58] sm:$0xf]
      %v1757 = vld [vmem:[%s4 + $0x5c] sm:$0xf]
      %v1758 = vld [vmem:[%s4 + $0x60] sm:$0xf]
      %v1759 = vld [vmem:[%s4 + $0x64] sm:$0xf]
      %v1760 = vld [vmem:[%s4 + $0x68] sm:$0xf]
      %v1761 = vld [vmem:[%s4 + $0x6c] sm:$0xf]
      %v1762 = vld [vmem:[%s4 + $0x70] sm:$0xf]
      %v1763 = vld [vmem:[%s4 + $0x74] sm:$0xf]
      %v1764 = vld [vmem:[%s4 + $0x78] sm:$0xf]
      %v1765 = vld [vmem:[%s4 + $0x7c] sm:$0xf]
      %v1798 = vunpack.c.l.b16 %v1734
      %v1799 = vunpack.c.l.b16 %v1735
      %v1800 = vunpack.c.l.b16 %v1736
      %v1801 = vunpack.c.l.b16 %v1737
      %v1802 = vunpack.c.l.b16 %v1738
      %v1803 = vunpack.c.l.b16 %v1739
      %v1804 = vunpack.c.l.b16 %v1740
      %v1805 = vunpack.c.l.b16 %v1741
      %v1806 = vunpack.c.l.b16 %v1742
      %v1807 = vunpack.c.l.b16 %v1743
      %v1808 = vunpack.c.l.b16 %v1744
      %v1809 = vunpack.c.l.b16 %v1745
      %v1810 = vunpack.c.l.b16 %v1746
      %v1811 = vunpack.c.l.b16 %v1747
      %v1812 = vunpack.c.l.b16 %v1748
      %v1813 = vunpack.c.l.b16 %v1749
      %v1814 = vunpack.c.l.b16 %v1750
      %v1815 = vunpack.c.l.b16 %v1751
      %v1816 = vunpack.c.l.b16 %v1752
      %v1817 = vunpack.c.l.b16 %v1753
      %v1818 = vunpack.c.l.b16 %v1754
      %v1819 = vunpack.c.l.b16 %v1755
      %v1820 = vunpack.c.l.b16 %v1756
      %v1821 = vunpack.c.l.b16 %v1757
      %v1822 = vunpack.c.l.b16 %v1758
      %v1823 = vunpack.c.l.b16 %v1759
      %v1824 = vunpack.c.l.b16 %v1760
      %v1825 = vunpack.c.l.b16 %v1761
      %v1826 = vunpack.c.l.b16 %v1762
      %v1827 = vunpack.c.l.b16 %v1763
      %v1828 = vunpack.c.l.b16 %v1764
      %v1829 = vunpack.c.l.b16 %v1765
      %v1830 = vpack.c.b16 %v1799, %v1798
      %v1831 = vpack.c.b16 %v1801, %v1800
      %v1832 = vpack.c.b16 %v1803, %v1802
      %v1833 = vpack.c.b16 %v1805, %v1804
      %v1834 = vpack.c.b16 %v1807, %v1806
      %v1835 = vpack.c.b16 %v1809, %v1808
      %v1836 = vpack.c.b16 %v1811, %v1810
      %v1837 = vpack.c.b16 %v1813, %v1812
      %v1838 = vpack.c.b16 %v1815, %v1814
      %v1839 = vpack.c.b16 %v1817, %v1816
      %v1840 = vpack.c.b16 %v1819, %v1818
      %v1841 = vpack.c.b16 %v1821, %v1820
      %v1842 = vpack.c.b16 %v1823, %v1822
      %v1843 = vpack.c.b16 %v1825, %v1824
      %v1844 = vpack.c.b16 %v1827, %v1826
      %v1845 = vpack.c.b16 %v1829, %v1828
      %1862 = vmatprep.subr.bf16.mxu0 0
      %1863 = vmatpush1.bf16.msra.mxu0 %v1830
      %1864 = vmatprep.subr.bf16.mxu0 0
      %1865 = vmatpush1.bf16.msra.mxu0 %v1831
      %1866 = vmatprep.subr.bf16.mxu0 0
      %1867 = vmatpush1.bf16.msra.mxu0 %v1832
      %1868 = vmatprep.subr.bf16.mxu0 0
      %1869 = vmatpush1.bf16.msra.mxu0 %v1833
      %1870 = vmatprep.subr.bf16.mxu0 0
      %1871 = vmatpush1.bf16.msra.mxu0 %v1834
      %1872 = vmatprep.subr.bf16.mxu0 0
      %1873 = vmatpush1.bf16.msra.mxu0 %v1835
      %1874 = vmatprep.subr.bf16.mxu0 0
      %1875 = vmatpush1.bf16.msra.mxu0 %v1836
      %1876 = vmatprep.subr.bf16.mxu0 0
      %1877 = vmatpush1.bf16.msra.mxu0 %v1837
      %1878 = vmatprep.subr.bf16.mxu0 0
      %1879 = vmatpush1.bf16.msra.mxu0 %v1838
      %1880 = vmatprep.subr.bf16.mxu0 0
      %1881 = vmatpush1.bf16.msra.mxu0 %v1839
      %1882 = vmatprep.subr.bf16.mxu0 0
      %1883 = vmatpush1.bf16.msra.mxu0 %v1840
      %1884 = vmatprep.subr.bf16.mxu0 0
      %1885 = vmatpush1.bf16.msra.mxu0 %v1841
      %1886 = vmatprep.subr.bf16.mxu0 0
      %1887 = vmatpush1.bf16.msra.mxu0 %v1842
      %1888 = vmatprep.subr.bf16.mxu0 0
      %1889 = vmatpush1.bf16.msra.mxu0 %v1843
      %1890 = vmatprep.subr.bf16.mxu0 0
      %1891 = vmatpush1.bf16.msra.mxu0 %v1844
      %1892 = vmatprep.subr.bf16.mxu0 0
      %1893 = vmatpush1.bf16.msra.mxu0 %v1845
      %1894 = vmatprep.mubr.bf16.mxu0 %v1717
      %1895 = vmatmul.mubr.bf16.gmra.mrb[0].mxu0 %v1716
      %v1896 = vpop.f32.mrb[0].mxu0
      %v1897 = vadd.f32 1e-06, %v1896
      %v1898 = vpop.f32.mrb[0].mxu0
      %v1899 = vpop.f32.mrb[0].mxu0
      %v1900 = vadd.f32 1e-06, %v1899
      %v1901 = vpop.f32.mrb[0].mxu0
      %1902 = vmatprep.mubr.bf16.mxu0 %v1719
      %1903 = vmatmul.mubr.bf16.gmra.mrb[0].mxu0 %v1718
      %v1904 = vpop.f32.mrb[0].mxu0
      %v1905 = vadd.f32 1e-06, %v1904
      %v1906 = vpop.f32.mrb[0].mxu0
      %v1907 = vpop.f32.mrb[0].mxu0
      %v1908 = vadd.f32 1e-06, %v1907
      %v1909 = vpop.f32.mrb[0].mxu0
      %1910 = vmatprep.mubr.bf16.mxu0 %v1721
      %1911 = vmatmul.mubr.bf16.gmra.mrb[0].mxu0 %v1720
      %v1912 = vpop.f32.mrb[0].mxu0
      %v1913 = vadd.f32 1e-06, %v1912
      %v1914 = vpop.f32.mrb[0].mxu0
      %v1915 = vpop.f32.mrb[0].mxu0
      %v1916 = vadd.f32 1e-06, %v1915
      %v1917 = vpop.f32.mrb[0].mxu0
      %1918 = vmatprep.mubr.bf16.mxu0 %v1723
      %1919 = vmatmul.mubr.bf16.gmra.mrb[0].mxu0 %v1722
      %v1920 = vpop.f32.mrb[0].mxu0
      %v1921 = vadd.f32 1e-06, %v1920
      %v1922 = vpop.f32.mrb[0].mxu0
      %v1923 = vpop.f32.mrb[0].mxu0
      %v1924 = vadd.f32 1e-06, %v1923
      %v1925 = vpop.f32.mrb[0].mxu0
      %1926 = vmatprep.mubr.bf16.mxu0 %v1725
      %1927 = vmatmul.mubr.bf16.gmra.mrb[0].mxu0 %v1724
      %v1928 = vpop.f32.mrb[0].mxu0
      %v1929 = vadd.f32 1e-06, %v1928
      %v1930 = vpop.f32.mrb[0].mxu0
      %v1931 = vpop.f32.mrb[0].mxu0
      %v1932 = vadd.f32 1e-06, %v1931
      %v1933 = vpop.f32.mrb[0].mxu0
      %1934 = vmatprep.mubr.bf16.mxu0 %v1727
      %1935 = vmatmul.mubr.bf16.gmra.mrb[0].mxu0 %v1726
      %v1936 = vpop.f32.mrb[0].mxu0
      %v1937 = vadd.f32 1e-06, %v1936
      %v1938 = vpop.f32.mrb[0].mxu0
      %v1939 = vpop.f32.mrb[0].mxu0
      %v1940 = vadd.f32 1e-06, %v1939
      %v1941 = vpop.f32.mrb[0].mxu0
      %1942 = vmatprep.mubr.bf16.mxu0 %v1729
      %1943 = vmatmul.mubr.bf16.gmra.mrb[0].mxu0 %v1728
      %v1944 = vpop.f32.mrb[0].mxu0
      %v1945 = vadd.f32 1e-06, %v1944
      %v1946 = vpop.f32.mrb[0].mxu0
      %v1947 = vpop.f32.mrb[0].mxu0
      %v1948 = vadd.f32 1e-06, %v1947
      %v1949 = vpop.f32.mrb[0].mxu0
      %1950 = vmatprep.mubr.bf16.mxu0 %v1731
      %1951 = vmatmul.mubr.bf16.gmra.mrb[0].mxu0 %v1730
      %v1952 = vpop.f32.mrb[0].mxu0
      %v1953 = vadd.f32 1e-06, %v1952
      %v1954 = vpop.f32.mrb[0].mxu0
      %v1955 = vpop.f32.mrb[0].mxu0
      %v1956 = vadd.f32 1e-06, %v1955
      %v1957 = vpop.f32.mrb[0].mxu0
      %1958 = vmatprep.mubr.bf16.mxu0 %v1733
      %1959 = vmatmul.mubr.bf16.gmra.mrb[0].mxu0 %v1732
      %v1960 = vpop.f32.mrb[0].mxu0
      %v1961 = vadd.f32 1e-06, %v1960
      %v1962 = vpop.f32.mrb[0].mxu0
      %v1963 = vpop.f32.mrb[0].mxu0
      %v1964 = vpop.f32.mrb[0].mxu0
      %1965 = vdwg.mxu0
      %v1966 = vlog2.pop %v1897
      %v1967 = vmul.f32 %v1966, 0.6931472
      %v1968 = vlog2.pop %v1900
      %v1969 = vmul.f32 %v1968, 0.6931472
      %v1970 = vlog2.pop %v1905
      %v1971 = vmul.f32 %v1970, 0.6931472
      %v1972 = vlog2.pop %v1908
      %v1973 = vmul.f32 %v1972, 0.6931472
      %v1974 = vlog2.pop %v1913
      %v1975 = vmul.f32 %v1974, 0.6931472
      %v1976 = vlog2.pop %v1916
      %v1977 = vmul.f32 %v1976, 0.6931472
      %v1978 = vlog2.pop %v1921
      %v1979 = vmul.f32 %v1978, 0.6931472
      %v1980 = vlog2.pop %v1924
      %v1981 = vmul.f32 %v1980, 0.6931472
      %v1982 = vlog2.pop %v1929
      %v1983 = vmul.f32 %v1982, 0.6931472
      %v1984 = vlog2.pop %v1932
      %v1985 = vmul.f32 %v1984, 0.6931472
      %v1986 = vlog2.pop %v1937
      %v1987 = vmul.f32 %v1986, 0.6931472
      %v1988 = vlog2.pop %v1940
      %v1989 = vmul.f32 %v1988, 0.6931472
      %v1990 = vlog2.pop %v1945
      %v1991 = vmul.f32 %v1990, 0.6931472
      %v1992 = vlog2.pop %v1948
      %v1993 = vmul.f32 %v1992, 0.6931472
      %v1994 = vlog2.pop %v1953
      %v1995 = vmul.f32 %v1994, 0.6931472
      %v1996 = vlog2.pop %v1956
      %v1997 = vmul.f32 %v1996, 0.6931472
      %v1998 = vlog2.pop %v1961
      %v1999 = vmul.f32 %v1998, 0.6931472
      %v2000 = vld [vmem:[%s5] sm:$0xff]
      %v2001 = vld [vmem:[%s5 + $0x8] sm:$0xff]
      %v2002 = vld [vmem:[%s5 + $0x10] sm:$0xff]
      %v2003 = vld [vmem:[%s5 + $0x18] sm:$0xff]
      %v2004 = vld [vmem:[%s5 + $0x20] sm:$0xff]
      %2005 = vmatprep.subr.mxu0 0.0
      %2006 = vmatpush1.xpose.msra.mxu0 %v1967
      %2007 = vmatprep.subr.mxu0 0.0
      %2008 = vmatpush1.xpose.msra.mxu0 %v1969
      %2009 = vmatprep.subr.mxu0 0.0
      %2010 = vmatpush1.xpose.msra.mxu0 %v1971
      %2011 = vmatprep.subr.mxu0 0.0
      %2012 = vmatpush1.xpose.msra.mxu0 %v1973
      %2013 = vmatprep.subr.mxu0 0.0
      %2014 = vmatpush1.xpose.msra.mxu0 %v1975
      %2015 = vmatprep.subr.mxu0 0.0
      %2016 = vmatpush1.xpose.msra.mxu0 %v1977
      %2017 = vmatprep.subr.mxu0 0.0
      %2018 = vmatpush1.xpose.msra.mxu0 %v1979
      %2019 = vmatprep.subr.mxu0 0.0
      %2020 = vmatpush1.xpose.msra.mxu0 %v1981
      %2021 = vmatprep.subr.mxu0 0.0
      %2022 = vmatpush1.xpose.msra.mxu0 %v1983
      %2023 = vmatprep.subr.mxu0 0.0
      %2024 = vmatpush1.xpose.msra.mxu0 %v1985
      %2025 = vmatprep.subr.mxu0 0.0
      %2026 = vmatpush1.xpose.msra.mxu0 %v1987
      %2027 = vmatprep.subr.mxu0 0.0
      %2028 = vmatpush1.xpose.msra.mxu0 %v1989
      %2029 = vmatprep.subr.mxu0 0.0
      %2030 = vmatpush1.xpose.msra.mxu0 %v1991
      %2031 = vmatprep.subr.mxu0 0.0
      %2032 = vmatpush1.xpose.msra.mxu0 %v1993
      %2033 = vmatprep.subr.mxu0 0.0
      %2034 = vmatpush1.xpose.msra.mxu0 %v1995
      %2035 = vmatprep.subr.mxu0 0.0
      %2036 = vmatpush1.xpose.msra.mxu0 %v1997
      %2037 = vmatprep.subr.mxu0 0.0
      %2038 = vmatpush1.xpose.msra.mxu0 %v1999
      %2039 = vmatprep.subr.mxu0 0.0
      %2040 = vmatpush1.xpose.msra.mxu0 0.0
      %2041 = vmatprep.subr.mxu0 0.0
      %2042 = vmatpush1.xpose.msra.mxu0 0.0
      %2043 = vmatprep.subr.mxu0 0.0
      %2044 = vmatpush1.xpose.msra.mxu0 0.0
      %2045 = vmatprep.subr.mxu0 0.0
      %2046 = vmatpush1.xpose.msra.mxu0 0.0
      %2047 = vmatprep.subr.mxu0 0.0
      %2048 = vmatpush1.xpose.msra.mxu0 0.0
      %2049 = vmatprep.subr.mxu0 0.0
      %2050 = vmatpush1.xpose.msra.mxu0 0.0
      %2051 = vmatprep.subr.mxu0 0.0
      %2052 = vmatpush1.xpose.msra.mxu0 0.0
      %2053 = vmatprep.subr.mxu0 0.0
      %2054 = vmatpush1.xpose.msra.mxu0 0.0
      %2055 = vmatprep.subr.mxu0 0.0
      %2056 = vmatpush1.xpose.msra.mxu0 0.0
      %2057 = vmatprep.subr.mxu0 0.0
      %2058 = vmatpush1.xpose.msra.mxu0 0.0
      %2059 = vmatprep.subr.mxu0 0.0
      %2060 = vmatpush1.xpose.msra.mxu0 0.0
      %2061 = vmatprep.subr.mxu0 0.0
      %2062 = vmatpush1.xpose.msra.mxu0 0.0
      %2063 = vmatprep.subr.mxu0 0.0
      %2064 = vmatpush1.xpose.msra.mxu0 0.0
      %2065 = vmatprep.subr.mxu0 0.0
      %2066 = vmatpush1.xpose.msra.mxu0 0.0
      %2067 = vmatprep.subr.mxu0 0.0
      %2068 = vmatpush1.xpose.msra.mxu0 0.0
      %2069 = vmatprep.mubr.f32.mxu0 0.0
      %2070 = vmatmul.mubr.f32.gmra.mrb[0].mxu0 %v2000
      %v2071 = vpop.f32.mrb[0].mxu0
      %v2072 = vadd.f32 0.0, %v2071
      %v2073 = vpop.f32.mrb[0].mxu0
      %v2074 = vadd.f32 0.0, %v2073
      %2075 = vmatprep.mubr.f32.mxu0 0.0
      %2076 = vmatmul.mubr.f32.gmra.mrb[0].mxu0 %v2001
      %v2077 = vpop.f32.mrb[0].mxu0
      %v2078 = vadd.f32 0.0, %v2077
      %v2079 = vpop.f32.mrb[0].mxu0
      %v2080 = vadd.f32 0.0, %v2079
      %2081 = vmatprep.mubr.f32.mxu0 0.0
      %2082 = vmatmul.mubr.f32.gmra.mrb[0].mxu0 %v2002
      %v2083 = vpop.f32.mrb[0].mxu0
      %v2084 = vadd.f32 0.0, %v2083
      %v2085 = vpop.f32.mrb[0].mxu0
      %v2086 = vadd.f32 0.0, %v2085
      %2087 = vmatprep.mubr.f32.mxu0 0.0
      %2088 = vmatmul.mubr.f32.gmra.mrb[0].mxu0 %v2003
      %v2089 = vpop.f32.mrb[0].mxu0
      %v2090 = vadd.f32 0.0, %v2089
      %v2091 = vpop.f32.mrb[0].mxu0
      %v2092 = vadd.f32 0.0, %v2091
      %2093 = vmatprep.mubr.f32.mxu0 0.0
      %2094 = vmatmul.mubr.f32.gmra.mrb[0].mxu0 %v2004
      %v2095 = vpop.f32.mrb[0].mxu0
      %v2096 = vadd.f32 0.0, %v2095
      %v2097 = vpop.f32.mrb[0].mxu0
      %v2098 = vadd.f32 0.0, %v2097
      %2099 = vdwg.mxu0
      %v2100 = vlaneseq
      %v2101 = vand.u32 %v2100, 127
      %v2102 = vadd.s32 %v2101, 128
      %s2103 = ssub.s32 2, %s351
      %v2104 = vstv %s2103
      %vm2105 = vcmp.lt.s32.totalorder %v2101, %v2104
      %vm2106 = vcmp.lt.s32.totalorder %v2102, %v2104
      %2108 = vset.pattern.permute.xlu0 2
      %2109 = vperm.xlu0 %2108, %v2072
      %v2110 = vpop.permute.xlu0 %2109
      %2113 = vset.pattern.permute.xlu0 2
      %2114 = vperm.xlu0 %2113, %v2078
      %v2115 = vpop.permute.xlu0 %2114
      %2118 = vset.pattern.permute.xlu0 2
      %2119 = vperm.xlu0 %2118, %v2084
      %v2120 = vpop.permute.xlu0 %2119
      %2123 = vset.pattern.permute.xlu0 2
      %2124 = vperm.xlu0 %2123, %v2090
      %v2125 = vpop.permute.xlu0 %2124
      %2128 = vset.pattern.permute.xlu0 2
      %2129 = vperm.xlu0 %2128, %v2096
      %v2130 = vpop.permute.xlu0 %2129
      %v2132 = vsel %vm2105, %v2110, %v2072
      %v2133 = vsel %vm2106, %v2110, %v2074
      %v2134 = vsel %vm2105, %v2115, %v2078
      %v2135 = vsel %vm2106, %v2115, %v2080
      %v2136 = vsel %vm2105, %v2120, %v2084
      %v2137 = vsel %vm2106, %v2120, %v2086
      %v2138 = vsel %vm2105, %v2125, %v2090
      %v2139 = vsel %vm2106, %v2125, %v2092
      %v2140 = vsel %vm2105, %v2130, %v2096
      %v2141 = vsel %vm2106, %v2130, %v2098
      %s2142 = ssub.s32 10, %s351
      %v2143 = vstv %s2142
      %vm2144 = vcmp.eq.s32.totalorder %v2101, %v2143
      %vm2145 = vcmp.eq.s32.totalorder %v2102, %v2143
      %v2146 = vsel %vm2144, %v2132, 0.0
      %v2147 = vsel %vm2145, %v2133, 0.0
      %v2148 = vsel %vm2144, %v2134, 0.0
      %v2149 = vsel %vm2145, %v2135, 0.0
      %v2150 = vsel %vm2144, %v2136, 0.0
      %v2151 = vsel %vm2145, %v2137, 0.0
      %v2152 = vsel %vm2144, %v2138, 0.0
      %v2153 = vsel %vm2145, %v2139, 0.0
      %v2154 = vsel %vm2144, %v2140, 0.0
      %v2155 = vsel %vm2145, %v2141, 0.0
      %vm2156 = vcmask 31744
      %v2157 = vsel %vm2156, %v2147, 0.0
      %v2158 = vadd.f32 %v2146, %v2157
      %2159 = vadd.xlane.f32.xlu0 %v2158
      %v2160 = vpop.xlane.xlu0 %2159
      %v2161 = vsel %vm2156, %v2149, 0.0
      %v2162 = vadd.f32 %v2148, %v2161
      %2163 = vadd.xlane.f32.xlu0 %v2162
      %v2164 = vpop.xlane.xlu0 %2163
      %v2165 = vsel %vm2156, %v2151, 0.0
      %v2166 = vadd.f32 %v2150, %v2165
      %2167 = vadd.xlane.f32.xlu0 %v2166
      %v2168 = vpop.xlane.xlu0 %2167
      %v2169 = vsel %vm2156, %v2153, 0.0
      %v2170 = vadd.f32 %v2152, %v2169
      %2171 = vadd.xlane.f32.xlu0 %v2170
      %v2172 = vpop.xlane.xlu0 %2171
      %v2173 = vsel %vm2156, %v2155, 0.0
      %v2174 = vadd.f32 %v2154, %v2173
      %2175 = vadd.xlane.f32.xlu0 %v2174
      %v2176 = vpop.xlane.xlu0 %2175
      %vm2177 = vcmp.gt.s32.totalorder %v2101, %v2143
      %vm2178 = vcmp.gt.s32.totalorder %v2102, %v2143
      %v2179 = vsel %vm2177, %v2160, %v2132
      %v2180 = vsel %vm2178, %v2160, %v2133
      %v2181 = vsel %vm2177, %v2164, %v2134
      %v2182 = vsel %vm2178, %v2164, %v2135
      %v2183 = vsel %vm2177, %v2168, %v2136
      %v2184 = vsel %vm2178, %v2168, %v2137
      %v2185 = vsel %vm2177, %v2172, %v2138
      %v2186 = vsel %vm2178, %v2172, %v2139
      %v2187 = vsel %vm2177, %v2176, %v2140
      %v2188 = vsel %vm2178, %v2176, %v2141
      %2199 = vrot.lane.b32.xlu0 %v2179, 2
      %v2200 = vpop.permute.xlu0 %2199
      %2201 = vrot.lane.b32.xlu0 %v2180, 2
      %v2202 = vpop.permute.xlu0 %2201
      %2203 = vrot.lane.b32.xlu0 %v2181, 2
      %v2204 = vpop.permute.xlu0 %2203
      %2205 = vrot.lane.b32.xlu0 %v2182, 2
      %v2206 = vpop.permute.xlu0 %2205
      %2207 = vrot.lane.b32.xlu0 %v2183, 2
      %v2208 = vpop.permute.xlu0 %2207
      %2209 = vrot.lane.b32.xlu0 %v2184, 2
      %v2210 = vpop.permute.xlu0 %2209
      %2211 = vrot.lane.b32.xlu0 %v2185, 2
      %v2212 = vpop.permute.xlu0 %2211
      %2213 = vrot.lane.b32.xlu0 %v2186, 2
      %v2214 = vpop.permute.xlu0 %2213
      %2215 = vrot.lane.b32.xlu0 %v2187, 2
      %v2216 = vpop.permute.xlu0 %2215
      %2217 = vrot.lane.b32.xlu0 %v2188, 2
      %v2218 = vpop.permute.xlu0 %2217
      %vm2219 = vcmask 15360
      %v2220 = vsel %vm2219, %v2200, %v2202
      %v2221 = vsel %vm2219, %v2204, %v2206
      %v2222 = vsel %vm2219, %v2208, %v2210
      %v2223 = vsel %vm2219, %v2212, %v2214
      %v2224 = vsel %vm2219, %v2216, %v2218
      %v2235 = vsub.f32 %v2179, %v2200
      %v2236 = vsub.f32 %v2180, %v2220
      %v2237 = vsub.f32 %v2181, %v2204
      %v2238 = vsub.f32 %v2182, %v2221
      %v2239 = vsub.f32 %v2183, %v2208
      %v2240 = vsub.f32 %v2184, %v2222
      %v2241 = vsub.f32 %v2185, %v2212
      %v2242 = vsub.f32 %v2186, %v2223
      %v2243 = vsub.f32 %v2187, %v2216
      %v2244 = vsub.f32 %v2188, %v2224
      %v2245 = vmul.f32 %v2235, 0.5
      %v2246 = vmul.f32 %v2236, 0.5
      %v2247 = vmul.f32 %v2237, 0.5
      %v2248 = vmul.f32 %v2238, 0.5
      %v2249 = vmul.f32 %v2239, 0.5
      %v2250 = vmul.f32 %v2240, 0.5
      %v2251 = vmul.f32 %v2241, 0.5
      %v2252 = vmul.f32 %v2242, 0.5
      %v2253 = vmul.f32 %v2243, 0.5
      %v2254 = vmul.f32 %v2244, 0.5
      %s2255 = ssub.s32 0, %s351
      %v2256 = vstv %s2255
      %vm2257 = vcmp.eq.s32.totalorder %v2101, %v2256
      %vm2258 = vcmp.eq.s32.totalorder %v2102, %v2256
      %2260 = vset.pattern.permute.xlu0 3
      %2261 = vperm.xlu0 %2260, %v2245
      %v2262 = vpop.permute.xlu0 %2261
      %2265 = vset.pattern.permute.xlu0 3
      %2266 = vperm.xlu0 %2265, %v2247
      %v2267 = vpop.permute.xlu0 %2266
      %2270 = vset.pattern.permute.xlu0 3
      %2271 = vperm.xlu0 %2270, %v2249
      %v2272 = vpop.permute.xlu0 %2271
      %2275 = vset.pattern.permute.xlu0 3
      %2276 = vperm.xlu0 %2275, %v2251
      %v2277 = vpop.permute.xlu0 %2276
      %2280 = vset.pattern.permute.xlu0 3
      %2281 = vperm.xlu0 %2280, %v2253
      %v2282 = vpop.permute.xlu0 %2281
      %2289 = vrot.lane.b32.xlu0 %v2245, 126
      %v2290 = vpop.permute.xlu0 %2289
      %2291 = vrot.lane.b32.xlu0 %v2246, 126
      %v2292 = vpop.permute.xlu0 %2291
      %2293 = vrot.lane.b32.xlu0 %v2247, 126
      %v2294 = vpop.permute.xlu0 %2293
      %2295 = vrot.lane.b32.xlu0 %v2248, 126
      %v2296 = vpop.permute.xlu0 %2295
      %2297 = vrot.lane.b32.xlu0 %v2249, 126
      %v2298 = vpop.permute.xlu0 %2297
      %2299 = vrot.lane.b32.xlu0 %v2250, 126
      %v2300 = vpop.permute.xlu0 %2299
      %2301 = vrot.lane.b32.xlu0 %v2251, 126
      %v2302 = vpop.permute.xlu0 %2301
      %2303 = vrot.lane.b32.xlu0 %v2252, 126
      %v2304 = vpop.permute.xlu0 %2303
      %2305 = vrot.lane.b32.xlu0 %v2253, 126
      %v2306 = vpop.permute.xlu0 %2305
      %2307 = vrot.lane.b32.xlu0 %v2254, 126
      %v2308 = vpop.permute.xlu0 %2307
      %vm2309 = vcmask 1031168
      %v2310 = vsel %vm2309, %v2290, %v2292
      %v2311 = vsel %vm2309, %v2294, %v2296
      %v2312 = vsel %vm2309, %v2298, %v2300
      %v2313 = vsel %vm2309, %v2302, %v2304
      %v2314 = vsel %vm2309, %v2306, %v2308
      %v2325 = vsel %vm2257, %v2262, %v2310
      %v2326 = vsel %vm2258, %v2262, %v2292
      %v2327 = vsel %vm2257, %v2267, %v2311
      %v2328 = vsel %vm2258, %v2267, %v2296
      %v2329 = vsel %vm2257, %v2272, %v2312
      %v2330 = vsel %vm2258, %v2272, %v2300
      %v2331 = vsel %vm2257, %v2277, %v2313
      %v2332 = vsel %vm2258, %v2277, %v2304
      %v2333 = vsel %vm2257, %v2282, %v2314
      %v2334 = vsel %vm2258, %v2282, %v2308
      %2345 = vrot.lane.b32.xlu0 %v2325, 1
      %v2346 = vpop.permute.xlu0 %2345
      %2347 = vrot.lane.b32.xlu0 %v2326, 1
      %v2348 = vpop.permute.xlu0 %2347
      %2349 = vrot.lane.b32.xlu0 %v2327, 1
      %v2350 = vpop.permute.xlu0 %2349
      %2351 = vrot.lane.b32.xlu0 %v2328, 1
      %v2352 = vpop.permute.xlu0 %2351
      %2353 = vrot.lane.b32.xlu0 %v2329, 1
      %v2354 = vpop.permute.xlu0 %2353
      %2355 = vrot.lane.b32.xlu0 %v2330, 1
      %v2356 = vpop.permute.xlu0 %2355
      %2357 = vrot.lane.b32.xlu0 %v2331, 1
      %v2358 = vpop.permute.xlu0 %2357
      %2359 = vrot.lane.b32.xlu0 %v2332, 1
      %v2360 = vpop.permute.xlu0 %2359
      %2361 = vrot.lane.b32.xlu0 %v2333, 1
      %v2362 = vpop.permute.xlu0 %2361
      %2363 = vrot.lane.b32.xlu0 %v2334, 1
      %v2364 = vpop.permute.xlu0 %2363
      %vm2365 = vcmask 7168
      %v2366 = vsel %vm2365, %v2346, %v2348
      %v2367 = vsel %vm2365, %v2350, %v2352
      %v2368 = vsel %vm2365, %v2354, %v2356
      %v2369 = vsel %vm2365, %v2358, %v2360
      %v2370 = vsel %vm2365, %v2362, %v2364
      %v2381 = vsel %vm2365, %v2325, %v2346
      %v2382 = vsel %vm2365, %v2327, %v2350
      %v2383 = vsel %vm2365, %v2329, %v2354
      %v2384 = vsel %vm2365, %v2331, %v2358
      %v2385 = vsel %vm2365, %v2333, %v2362
      %v2386 = vsel %vm2144, %v2381, %v2325
      %v2387 = vsel %vm2145, %v2366, %v2326
      %v2388 = vsel %vm2144, %v2382, %v2327
      %v2389 = vsel %vm2145, %v2367, %v2328
      %v2390 = vsel %vm2144, %v2383, %v2329
      %v2391 = vsel %vm2145, %v2368, %v2330
      %v2392 = vsel %vm2144, %v2384, %v2331
      %v2393 = vsel %vm2145, %v2369, %v2332
      %v2394 = vsel %vm2144, %v2385, %v2333
      %v2395 = vsel %vm2145, %v2370, %v2334
      %2396 = vrot.lane.b32.xlu0 %v2179, 126
      %v2397 = vpop.permute.xlu0 %2396
      %2398 = vrot.lane.b32.xlu0 %v2180, 126
      %v2399 = vpop.permute.xlu0 %2398
      %2400 = vrot.lane.b32.xlu0 %v2181, 126
      %v2401 = vpop.permute.xlu0 %2400
      %2402 = vrot.lane.b32.xlu0 %v2182, 126
      %v2403 = vpop.permute.xlu0 %2402
      %2404 = vrot.lane.b32.xlu0 %v2183, 126
      %v2405 = vpop.permute.xlu0 %2404
      %2406 = vrot.lane.b32.xlu0 %v2184, 126
      %v2407 = vpop.permute.xlu0 %2406
      %2408 = vrot.lane.b32.xlu0 %v2185, 126
      %v2409 = vpop.permute.xlu0 %2408
      %2410 = vrot.lane.b32.xlu0 %v2186, 126
      %v2411 = vpop.permute.xlu0 %2410
      %2412 = vrot.lane.b32.xlu0 %v2187, 126
      %v2413 = vpop.permute.xlu0 %2412
      %2414 = vrot.lane.b32.xlu0 %v2188, 126
      %v2415 = vpop.permute.xlu0 %2414
      %v2416 = vsel %vm2309, %v2397, %v2399
      %v2417 = vsel %vm2309, %v2401, %v2403
      %v2418 = vsel %vm2309, %v2405, %v2407
      %v2419 = vsel %vm2309, %v2409, %v2411
      %v2420 = vsel %vm2309, %v2413, %v2415
      %2426 = vst [vmem:[%s349] sm:$0xff] %v2416
      %2427 = vst [vmem:[%s349 + $0x8] sm:$0xff] %v2417
      %2428 = vst [vmem:[%s349 + $0x10] sm:$0xff] %v2418
      %2429 = vst [vmem:[%s349 + $0x18] sm:$0xff] %v2419
      %2430 = vst [vmem:[%s349 + $0x20] sm:$0xff] %v2420
      %2441 = vrot.lane.b32.xlu0 %v2386, 127
      %v2442 = vpop.permute.xlu0 %2441
      %2443 = vrot.lane.b32.xlu0 %v2387, 127
      %v2444 = vpop.permute.xlu0 %2443
      %2445 = vrot.lane.b32.xlu0 %v2388, 127
      %v2446 = vpop.permute.xlu0 %2445
      %2447 = vrot.lane.b32.xlu0 %v2389, 127
      %v2448 = vpop.permute.xlu0 %2447
      %2449 = vrot.lane.b32.xlu0 %v2390, 127
      %v2450 = vpop.permute.xlu0 %2449
      %2451 = vrot.lane.b32.xlu0 %v2391, 127
      %v2452 = vpop.permute.xlu0 %2451
      %2453 = vrot.lane.b32.xlu0 %v2392, 127
      %v2454 = vpop.permute.xlu0 %2453
      %2455 = vrot.lane.b32.xlu0 %v2393, 127
      %v2456 = vpop.permute.xlu0 %2455
      %2457 = vrot.lane.b32.xlu0 %v2394, 127
      %v2458 = vpop.permute.xlu0 %2457
      %2459 = vrot.lane.b32.xlu0 %v2395, 127
      %v2460 = vpop.permute.xlu0 %2459
      %vm2461 = vcmask 1039360
      %v2462 = vsel %vm2461, %v2442, %v2444
      %v2463 = vsel %vm2461, %v2446, %v2448
      %v2464 = vsel %vm2461, %v2450, %v2452
      %v2465 = vsel %vm2461, %v2454, %v2456
      %v2466 = vsel %vm2461, %v2458, %v2460
      %2472 = vst [vmem:[%s349 + $0x28] sm:$0xff] %v2462
      %2473 = vst [vmem:[%s349 + $0x30] sm:$0xff] %v2463
      %2474 = vst [vmem:[%s349 + $0x38] sm:$0xff] %v2464
      %2475 = vst [vmem:[%s349 + $0x40] sm:$0xff] %v2465
      %2476 = vst [vmem:[%s349 + $0x48] sm:$0xff] %v2466
      %2477 = vrot.lane.b32.xlu0 %v2386, 2
      %v2478 = vpop.permute.xlu0 %2477
      %2479 = vrot.lane.b32.xlu0 %v2388, 2
      %v2480 = vpop.permute.xlu0 %2479
      %2481 = vrot.lane.b32.xlu0 %v2390, 2
      %v2482 = vpop.permute.xlu0 %2481
      %2483 = vrot.lane.b32.xlu0 %v2392, 2
      %v2484 = vpop.permute.xlu0 %2483
      %2485 = vrot.lane.b32.xlu0 %v2394, 2
      %v2486 = vpop.permute.xlu0 %2485
      %v2492 = vsub.f32 %v2386, %v2478
      %v2493 = vsub.f32 %v2387, %v2478
      %v2494 = vsub.f32 %v2388, %v2480
      %v2495 = vsub.f32 %v2389, %v2480
      %v2496 = vsub.f32 %v2390, %v2482
      %v2497 = vsub.f32 %v2391, %v2482
      %v2498 = vsub.f32 %v2392, %v2484
      %v2499 = vsub.f32 %v2393, %v2484
      %v2500 = vsub.f32 %v2394, %v2486
      %v2501 = vsub.f32 %v2395, %v2486
      %v2502 = vmul.f32 %v2492, 0.5
      %v2503 = vmul.f32 %v2493, 0.5
      %v2504 = vmul.f32 %v2494, 0.5
      %v2505 = vmul.f32 %v2495, 0.5
      %v2506 = vmul.f32 %v2496, 0.5
      %v2507 = vmul.f32 %v2497, 0.5
      %v2508 = vmul.f32 %v2498, 0.5
      %v2509 = vmul.f32 %v2499, 0.5
      %v2510 = vmul.f32 %v2500, 0.5
      %v2511 = vmul.f32 %v2501, 0.5
      %2522 = vrot.lane.b32.xlu0 %v2502, 126
      %v2523 = vpop.permute.xlu0 %2522
      %2524 = vrot.lane.b32.xlu0 %v2503, 126
      %v2525 = vpop.permute.xlu0 %2524
      %2526 = vrot.lane.b32.xlu0 %v2504, 126
      %v2527 = vpop.permute.xlu0 %2526
      %2528 = vrot.lane.b32.xlu0 %v2505, 126
      %v2529 = vpop.permute.xlu0 %2528
      %2530 = vrot.lane.b32.xlu0 %v2506, 126
      %v2531 = vpop.permute.xlu0 %2530
      %2532 = vrot.lane.b32.xlu0 %v2507, 126
      %v2533 = vpop.permute.xlu0 %2532
      %2534 = vrot.lane.b32.xlu0 %v2508, 126
      %v2535 = vpop.permute.xlu0 %2534
      %2536 = vrot.lane.b32.xlu0 %v2509, 126
      %v2537 = vpop.permute.xlu0 %2536
      %2538 = vrot.lane.b32.xlu0 %v2510, 126
      %v2539 = vpop.permute.xlu0 %2538
      %2540 = vrot.lane.b32.xlu0 %v2511, 126
      %v2541 = vpop.permute.xlu0 %2540
      %v2542 = vsel %vm2309, %v2523, %v2525
      %v2543 = vsel %vm2309, %v2527, %v2529
      %v2544 = vsel %vm2309, %v2531, %v2533
      %v2545 = vsel %vm2309, %v2535, %v2537
      %v2546 = vsel %vm2309, %v2539, %v2541
      %2552 = vst [vmem:[%s349 + $0x50] sm:$0xff] %v2542
      %2553 = vst [vmem:[%s349 + $0x58] sm:$0xff] %v2543
      %2554 = vst [vmem:[%s349 + $0x60] sm:$0xff] %v2544
      %2555 = vst [vmem:[%s349 + $0x68] sm:$0xff] %v2545
      %2556 = vst [vmem:[%s349 + $0x70] sm:$0xff] %v2546
      %p2557 = scmp.lt.s32.totalorder %s21, 1
      %s2558 = scalar_select %p2557, %s21, 1
      %p2559 = scmp.lt.s32.totalorder %s22, 0
      %s2560 = scalar_select %p2559, %s22, 0
      %s2561 = smul.addr %s2558, 15
      %s2562 = sadd.s32 %s2560, %s2561
      %s2563 = smul.addr %s2562, 8
      %s2564 = scalar_lea.vmem %s6, %s2563
      // Predicated region
      $region45: #{lfcc_pt_forward.1} parent=43 // pred_check
        %p2565 = pneg %p189
      $region46: #{lfcc_pt_forward.1} parent=43 // pred_check_branch
        %2567 = sbr.rel (%p2565) target = $region48
      $region47: #{lfcc_pt_forward.1} parent=43 // pred_region
        _
      $region48: #{lfcc_pt_forward.1} parent=43 // pred_fallthru
        _
    $region44: #{lfcc_pt_forward.1} parent=5 // pred_fallthru
      _
    %p2568 = scmp.le.s32.totalorder 2, %s12
    // Predicated region
    $region49: #{lfcc_pt_forward.1} parent=5 // pred_check
      %p2569 = pneg %p2568
    $region50: #{lfcc_pt_forward.1} parent=5 // pred_check_branch
      %2571 = sbr.rel (%p2569) target = $region52
    $region51: #{lfcc_pt_forward.1} parent=5 // pred_region
      %s2572 = ssub.s32 %s12, 2
      // Predicated region
      $region53: #{lfcc_pt_forward.1} parent=51 // pred_check
        %p2573 = pneg %p195
      $region54: #{lfcc_pt_forward.1} parent=51 // pred_check_branch
        %2575 = sbr.rel (%p2573) target = $region56
      $region55: #{lfcc_pt_forward.1} parent=51 // pred_region
        %p2576 = scmp.lt.s32.totalorder %s23, 1
        %s2577 = scalar_select %p2576, %s23, 1
        %p2578 = scmp.lt.s32.totalorder %s24, 0
        %s2579 = scalar_select %p2578, %s24, 0
        %s2580 = smul.addr %s2577, 15
        %s2581 = sadd.s32 %s2579, %s2580
        %s2582 = smul.addr %s2581, 8
        %s2583 = scalar_lea.vmem %s6, %s2582
      $region56: #{lfcc_pt_forward.1} parent=51 // pred_fallthru
        _
    $region52: #{lfcc_pt_forward.1} parent=5 // pred_fallthru
      _
  $region6: #{lfcc_pt_forward.1} parent=0 // loop_footer
    %s16 = sadd.s32 1, %s12
  $region7: #{lfcc_pt_forward.1} parent=0 // loop_footer_branch
    %11 = sbr.rel target = $region3
  $region8: #{lfcc_pt_forward.1} parent=0 // loop_exit
    _

</llo_original>
